<compile_context>
chip_gen: v7x
topology: tpu7x:2x2x1
jax: 0.10.0
libtpu: 0.0.40
codegen_flags: <defaults>
</compile_context>

<pallas_src>
import jax
import jax.numpy as jnp
import numpy as np
from jax.experimental import pallas as pl
from jax.experimental.pallas import tpu as pltpu


# ----------------------------- Pallas kernel ------------------------------

def _build_kernel(B, L, H, alpha):
    """Returns the Pallas kernel body (shapes/alpha baked in as Python ints)."""

    def kernel(x_ref,       # (L*B, H)  bf16, time-major word+entity features
               mask_ref,    # (B, L)    f32 mask (lane-dense)
               xevt_ref,    # (B, H)    f32 event embedding (query + "last")
               wih0_ref,    # (H, 4H)   bf16 layer-0 input weights (gate-permuted)
               whh0_ref,    # (H, 4H)   bf16 layer-0 recurrent weights
               b0_ref,      # (1, 4H)   f32 layer-0 fused bias (gate-permuted)
               wih1_ref,    # (H, 4H)   bf16 layer-1 input weights
               whh1_ref,    # (H, 4H)   bf16 layer-1 recurrent weights
               b1_ref,      # (1, 4H)   f32 layer-1 fused bias
               score_ref):  # out (B, 1) f32

        mask = mask_ref[...]
        xevt = xevt_ref[...]
        whh0 = whh0_ref[...]
        wih1 = wih1_ref[...]
        whh1 = whh1_ref[...]

        # ---- hoisted layer-0 input projection: one bf16 MXU call for all
        #      timesteps, bias folded (off the serial chain). -----------------
        proj0 = jnp.dot(x_ref[...], wih0_ref[...],
                        preferred_element_type=jnp.float32) + b0_ref[...]
        # proj0: (L*B, 4H) f32, time-major; per-step slice is a contiguous
        # sublane block — no reshape needed.

        # Pre-broadcast layer-1 bias once (JAX does not CSE broadcasts).
        b1b = jnp.broadcast_to(b1_ref[...], (B, 4 * H))

        def gates(gv):
            # Gate order after host-side column permutation: [g, i, f, o].
            gg = jnp.tanh(gv[:, :H])            # narrow tanh, offset 0, no roll
            sg = jax.nn.sigmoid(gv)             # one full-width sigmoid
            i = pltpu.roll(sg, 3 * H, 1)[:, :H]
            f = pltpu.roll(sg, 2 * H, 1)[:, :H]
            o = pltpu.roll(sg, 1 * H, 1)[:, :H]
            return i, f, gg, o

        def lstm_state(g, c_prev):
            i, f, gg, o = gates(g)
            c = f * c_prev + i * gg
            h = o * jnp.tanh(c)
            return h, c

        def cell0(t, h_prev_b, c_prev):
            # Only the serial h->h matmul lives in the loop (x-projection is
            # precomputed above).
            g = proj0[t * B:(t + 1) * B, :] + jnp.dot(
                h_prev_b, whh0, preferred_element_type=jnp.float32)
            return lstm_state(g, c_prev)

        def cell1(h_in_b, h_prev_b, c_prev):
            # Un-fused dots: the h_prev contribution is independent of this
            # step's h0 and can issue early, off the critical chain.
            g = (jnp.dot(h_in_b, wih1, preferred_element_type=jnp.float32)
                 + jnp.dot(h_prev_b, whh1, preferred_element_type=jnp.float32)
                 + b1b)
            return lstm_state(g, c_prev)

        zf = jnp.zeros((B, H), jnp.float32)
        zb = jnp.zeros((B, H), jnp.bfloat16)

        # Skewed static unroll: layer-1 step t-1 is emitted next to layer-0
        # step t (they are independent), shortening the serial chain.
        h0, c0 = cell0(0, zb, zf)
        h0b = h0.astype(jnp.bfloat16)
        h1b, c1 = zb, zf
        h1_steps = []
        for t in range(1, L):
            h0_new, c0 = cell0(t, h0b, c0)        # layer-0, step t
            h1, c1 = cell1(h0b, h1b, c1)          # layer-1, step t-1
            h1_steps.append(h1)
            h0b = h0_new.astype(jnp.bfloat16)
            h1b = h1.astype(jnp.bfloat16)
        h1, c1 = cell1(h0b, h1b, c1)              # layer-1, step L-1
        h1_steps.append(h1)

        # ---- attention + score, vectorized over L (off the serial chain) ----
        h1_all = jnp.stack(h1_steps, axis=1)                      # (B, L, H)
        logits = jnp.sum(h1_all * xevt[:, None, :], axis=-1)      # (B, L)
        ml = logits * mask
        # Matches the torch module exactly: no max-subtraction; a fully
        # masked row yields 0/0 = NaN just like the original (no guard).
        a = jnp.exp(ml) * mask
        den = jnp.sum(a, axis=1, keepdims=True)                   # (B, 1)
        num = jnp.sum(ml * a, axis=1, keepdims=True)              # (B, 1)
        score1 = num / den

        # torch: output, (cell, hidden) = lstm(x); nn.LSTM returns (h_n, c_n),
        # so "hidden" is c_n and hidden[1] is the layer-1 final cell state.
        score2 = jnp.sum(c1 * xevt, axis=1, keepdims=True)        # (B, 1)
        score_ref[...] = score1 * alpha + score2 * (1.0 - alpha)

    return kernel


# ------------------------ host-side parameter prep -------------------------

_GATE_PERM = (2, 0, 1, 3)   # torch gate order [i, f, g, o] -> kernel [g, i, f, o]


def _permute_gate_cols(w, H):
    """Permute the 4 gate blocks along the last axis into kernel order."""
    return jnp.concatenate([w[..., k * H:(k + 1) * H] for k in _GATE_PERM],
                           axis=-1)


def prepare_params(params):
    """One-time prep (outside the per-call path): gate-column permutation and
    bf16 casts of the MXU weights.  Biases are already fused (b_ih + b_hh)."""
    H = params["evt_emb"].shape[1]
    return {
        "ent_emb": params["ent_emb"].astype(jnp.float32),
        "evt_emb": params["evt_emb"].astype(jnp.float32),
        "wih0": _permute_gate_cols(params["wih0"], H).astype(jnp.bfloat16),
        "whh0": _permute_gate_cols(params["whh0"], H).astype(jnp.bfloat16),
        "b0": _permute_gate_cols(params["b0"], H).astype(jnp.float32),
        "wih1": _permute_gate_cols(params["wih1"], H).astype(jnp.bfloat16),
        "whh1": _permute_gate_cols(params["whh1"], H).astype(jnp.bfloat16),
        "b1": _permute_gate_cols(params["b1"], H).astype(jnp.float32),
    }


def event_detation_pallas(sent, evt, mask, ent, prep, *, alpha, max_l):
    """Glue + pallas_call.  sent:(B,L,emb_dim) f32, evt:(B,1) i32,
    mask:(B,L), ent:(B,L) i32, prep = prepare_params(params)."""
    B, L, _ = sent.shape
    assert L == max_l
    H = prep["evt_emb"].shape[1]

    # Embedding gathers / concat / layout stay in XLA (fused, free-ish); the
    # kernel receives a time-major flat slab so it never reshapes.
    x_e = prep["ent_emb"][ent]                                        # (B, L, dim_ent)
    x = jnp.concatenate([sent.astype(jnp.float32), x_e], axis=2)      # (B, L, H)
    x_tm = jnp.transpose(x, (1, 0, 2)).reshape(L * B, H).astype(jnp.bfloat16)
    x_evt = prep["evt_emb"][evt[:, 0]]                                # (B, H)
    mask_f = mask.astype(jnp.float32)                                 # (B, L)

    kernel = _build_kernel(B, L, H, float(alpha))

    full = lambda shape: pl.BlockSpec(shape, lambda i: tuple(0 for _ in shape))
    in_specs = [
        full((L * B, H)),       # x (time-major, bf16)
        full((B, L)),           # mask (lane-dense)
        full((B, H)),           # x_evt
        full((H, 4 * H)),       # wih0
        full((H, 4 * H)),       # whh0
        full((1, 4 * H)),       # b0
        full((H, 4 * H)),       # wih1
        full((H, 4 * H)),       # whh1
        full((1, 4 * H)),       # b1
    ]

    score = pl.pallas_call(
        kernel,
        grid=(1,),
        in_specs=in_specs,
        out_specs=pl.BlockSpec((B, 1), lambda i: (0, 0)),
        out_shape=jax.ShapeDtypeStruct((B, 1), jnp.float32),
        compiler_params=pltpu.CompilerParams(
            dimension_semantics=("arbitrary",)),
    )(x_tm, mask_f, x_evt,
      prep["wih0"], prep["whh0"], prep["b0"],
      prep["wih1"], prep["whh1"], prep["b1"])
    return score


# --------------------------- pure-JAX reference ----------------------------

def event_detation_ref(sent, evt, mask, ent, params, *, alpha):
    x_e = params["ent_emb"][ent]
    x_evt = params["evt_emb"][evt[:, 0]]
    x = jnp.concatenate([sent, x_e], axis=2)            # (B, L, H)
    B, L, H = x.shape

    def cell(x_t, h, c, wih, whh, b):
        g = x_t @ wih + h @ whh + b
        i = jax.nn.sigmoid(g[:, :H])
        f = jax.nn.sigmoid(g[:, H:2 * H])
        gg = jnp.tanh(g[:, 2 * H:3 * H])
        o = jax.nn.sigmoid(g[:, 3 * H:])
        c = f * c + i * gg
        return o * jnp.tanh(c), c

    h0 = c0 = h1 = c1 = jnp.zeros((B, H), jnp.float32)
    outs = []
    for t in range(L):
        h0, c0 = cell(x[:, t], h0, c0, params["wih0"], params["whh0"], params["b0"])
        h1, c1 = cell(h0, h1, c1, params["wih1"], params["whh1"], params["b1"])
        outs.append(h1)
    out = jnp.stack(outs, axis=1)                        # (B, L, H)
    logits = jnp.einsum("blh,bh->bl", out, x_evt) * mask
    a = jnp.exp(logits) * mask
    score1 = jnp.sum(logits * a / jnp.sum(a, axis=1, keepdims=True),
                     axis=1, keepdims=True)
    score2 = jnp.sum(c1 * x_evt, axis=1, keepdims=True)
    return score1 * alpha + score2 * (1.0 - alpha)


# --------------------------------- main ------------------------------------

if __name__ == "__main__":
    # opt: emb_dim=24, dim_ent=8 -> hidden_dim H=32; max_l=8; n_ent=10; n_class=5
    B, L = 2, 8
    EMB_DIM, DIM_ENT = 24, 8
    H = EMB_DIM + DIM_ENT
    N_ENT, N_CLASS = 10, 5
    ALPHA = 0.5

    key = jax.random.PRNGKey(0)
    keys = jax.random.split(key, 12)

    params = {
        "ent_emb": 0.1 * jax.random.normal(keys[0], (N_ENT, DIM_ENT), jnp.float32),
        "evt_emb": 0.1 * jax.random.normal(keys[1], (N_CLASS, H), jnp.float32),
        # LSTM layer 0 (stored pre-transposed: (H, 4H)); bias = b_ih + b_hh fused.
        "wih0": 0.1 * jax.random.normal(keys[2], (H, 4 * H), jnp.float32),
        "whh0": 0.1 * jax.random.normal(keys[3], (H, 4 * H), jnp.float32),
        "b0": 0.1 * jax.random.normal(keys[4], (1, 4 * H), jnp.float32),
        # LSTM layer 1
        "wih1": 0.1 * jax.random.normal(keys[5], (H, 4 * H), jnp.float32),
        "whh1": 0.1 * jax.random.normal(keys[6], (H, 4 * H), jnp.float32),
        "b1": 0.1 * jax.random.normal(keys[7], (1, 4 * H), jnp.float32),
    }

    # inputs: batch_sent_wd is already word embeddings in the torch forward.
    sent = 0.1 * jax.random.normal(keys[8], (B, L, EMB_DIM), jnp.float32)
    ent = jax.random.randint(keys[9], (B, L), 0, N_ENT, jnp.int32)
    evt = jax.random.randint(keys[10], (B, 1), 0, N_CLASS, jnp.int32)
    lengths = jnp.array([L, 5], jnp.int32)
    mask = (jnp.arange(L)[None, :] < lengths[:, None]).astype(jnp.float32)  # (B, L)

    prep = prepare_params(params)   # one-time: gate permutation + bf16 casts
    score = event_detation_pallas(sent, evt, mask, ent, prep,
                                  alpha=ALPHA, max_l=L)
    score = jax.block_until_ready(score)

    score_ref = event_detation_ref(sent, evt, mask, ent, params, alpha=ALPHA)
    # Tolerance loosened vs the pure-f32 kernel: MXU operands are bf16 now
    # (f32 accumulation); observed error is well below these bounds.
    np.testing.assert_allclose(np.asarray(score), np.asarray(score_ref),
                               rtol=2e-2, atol=5e-3)
    print("KERNEL_OK")
</pallas_src>

<mosaic_0001>
module attributes {stable_mosaic.version = 11 : i64} {
  func.func @kernel(%arg0: i32, %arg1: memref<16x32xbf16, #tpu.memory_space<vmem>>, %arg2: memref<2x8xf32, #tpu.memory_space<vmem>>, %arg3: memref<2x32xf32, #tpu.memory_space<vmem>>, %arg4: memref<32x128xbf16, #tpu.memory_space<vmem>>, %arg5: memref<32x128xbf16, #tpu.memory_space<vmem>>, %arg6: memref<1x128xf32, #tpu.memory_space<vmem>>, %arg7: memref<32x128xbf16, #tpu.memory_space<vmem>>, %arg8: memref<32x128xbf16, #tpu.memory_space<vmem>>, %arg9: memref<1x128xf32, #tpu.memory_space<vmem>>, %arg10: memref<2x1xf32, #tpu.memory_space<vmem>>) attributes {dimension_semantics = [#tpu.dimension_semantics<arbitrary>], iteration_bounds = array<i64: 1>, scalar_prefetch = 0 : i64, scratch_operands = 0 : i64, tpu.core_type = #tpu.core_type<tc>, window_params = [{pipeline_mode = #tpu.pipeline_mode<synchronous>, transform_indices = @transform_0, window_bounds = array<i64: 16, 32>}, {pipeline_mode = #tpu.pipeline_mode<synchronous>, transform_indices = @transform_1, window_bounds = array<i64: 2, 8>}, {pipeline_mode = #tpu.pipeline_mode<synchronous>, transform_indices = @transform_2, window_bounds = array<i64: 2, 32>}, {pipeline_mode = #tpu.pipeline_mode<synchronous>, transform_indices = @transform_3, window_bounds = array<i64: 32, 128>}, {pipeline_mode = #tpu.pipeline_mode<synchronous>, transform_indices = @transform_4, window_bounds = array<i64: 32, 128>}, {pipeline_mode = #tpu.pipeline_mode<synchronous>, transform_indices = @transform_5, window_bounds = array<i64: 1, 128>}, {pipeline_mode = #tpu.pipeline_mode<synchronous>, transform_indices = @transform_6, window_bounds = array<i64: 32, 128>}, {pipeline_mode = #tpu.pipeline_mode<synchronous>, transform_indices = @transform_7, window_bounds = array<i64: 32, 128>}, {pipeline_mode = #tpu.pipeline_mode<synchronous>, transform_indices = @transform_8, window_bounds = array<i64: 1, 128>}, {pipeline_mode = #tpu.pipeline_mode<synchronous>, transform_indices = @transform_9, window_bounds = array<i64: 2, 1>}]} {
    %c0 = arith.constant 0 : index
    %c0_0 = arith.constant 0 : index
    %0 = vector.load %arg2[%c0, %c0_0] : memref<2x8xf32, #tpu.memory_space<vmem>>, vector<2x8xf32>
    %c0_1 = arith.constant 0 : index
    %c0_2 = arith.constant 0 : index
    %1 = vector.load %arg3[%c0_1, %c0_2] : memref<2x32xf32, #tpu.memory_space<vmem>>, vector<2x32xf32>
    %c0_3 = arith.constant 0 : index
    %c0_4 = arith.constant 0 : index
    %2 = vector.load %arg5[%c0_3, %c0_4] : memref<32x128xbf16, #tpu.memory_space<vmem>>, vector<32x128xbf16>
    %c0_5 = arith.constant 0 : index
    %c0_6 = arith.constant 0 : index
    %3 = vector.load %arg7[%c0_5, %c0_6] : memref<32x128xbf16, #tpu.memory_space<vmem>>, vector<32x128xbf16>
    %c0_7 = arith.constant 0 : index
    %c0_8 = arith.constant 0 : index
    %4 = vector.load %arg8[%c0_7, %c0_8] : memref<32x128xbf16, #tpu.memory_space<vmem>>, vector<32x128xbf16>
    %c0_9 = arith.constant 0 : index
    %c0_10 = arith.constant 0 : index
    %5 = vector.load %arg1[%c0_9, %c0_10] : memref<16x32xbf16, #tpu.memory_space<vmem>>, vector<16x32xbf16>
    %c0_11 = arith.constant 0 : index
    %c0_12 = arith.constant 0 : index
    %6 = vector.load %arg4[%c0_11, %c0_12] : memref<32x128xbf16, #tpu.memory_space<vmem>>, vector<32x128xbf16>
    %cst = arith.constant dense<0.000000e+00> : vector<16x128xf32>
    %7 = tpu.matmul %5, %6, %cst {dimension_numbers = #tpu.dot_dimension_numbers<[1], [0], [0], [1], [0, 0, 1, 1], [], []>} : vector<16x32xbf16>, vector<32x128xbf16>, vector<16x128xf32> -> vector<16x128xf32>
    %c0_13 = arith.constant 0 : index
    %c0_14 = arith.constant 0 : index
    %8 = vector.load %arg6[%c0_13, %c0_14] : memref<1x128xf32, #tpu.memory_space<vmem>>, vector<1x128xf32>
    %9 = vector.broadcast %8 : vector<1x128xf32> to vector<16x128xf32>
    %10 = arith.addf %7, %9 : vector<16x128xf32>
    %c0_15 = arith.constant 0 : index
    %c0_16 = arith.constant 0 : index
    %11 = vector.load %arg9[%c0_15, %c0_16] : memref<1x128xf32, #tpu.memory_space<vmem>>, vector<1x128xf32>
    %12 = vector.shape_cast %11 : vector<1x128xf32> to vector<1x128xf32>
    %13 = vector.broadcast %12 : vector<1x128xf32> to vector<2x128xf32>
    %cst_17 = arith.constant 0.000000e+00 : f32
    %14 = vector.broadcast %cst_17 : f32 to vector<2x32xf32>
    %cst_18 = arith.constant 0.000000e+00 : bf16
    %15 = vector.broadcast %cst_18 : bf16 to vector<2x32xbf16>
    %16 = vector.extract_strided_slice %10 {offsets = [0, 0], sizes = [2, 128], strides = [1, 1]} : vector<16x128xf32> to vector<2x128xf32>
    %cst_19 = arith.constant dense<0.000000e+00> : vector<2x128xf32>
    %17 = tpu.matmul %15, %2, %cst_19 {dimension_numbers = #tpu.dot_dimension_numbers<[1], [0], [0], [1], [0, 0, 1, 1], [], []>} : vector<2x32xbf16>, vector<32x128xbf16>, vector<2x128xf32> -> vector<2x128xf32>
    %18 = arith.addf %16, %17 : vector<2x128xf32>
    %19 = vector.extract_strided_slice %18 {offsets = [0, 0], sizes = [2, 32], strides = [1, 1]} : vector<2x128xf32> to vector<2x32xf32>
    %20 = math.tanh %19 : vector<2x32xf32>
    %21 = arith.negf %18 : vector<2x128xf32>
    %22 = math.exp %21 : vector<2x128xf32>
    %cst_20 = arith.constant 1.000000e+00 : f32
    %23 = vector.broadcast %cst_20 : f32 to vector<2x128xf32>
    %24 = arith.addf %23, %22 : vector<2x128xf32>
    %25 = arith.divf %23, %24 : vector<2x128xf32>
    %c96_i32 = arith.constant 96 : i32
    %26 = tpu.dynamic_rotate %25 by %c96_i32 dim 1 : vector<2x128xf32>, i32 -> vector<2x128xf32>
    %27 = vector.extract_strided_slice %26 {offsets = [0, 0], sizes = [2, 32], strides = [1, 1]} : vector<2x128xf32> to vector<2x32xf32>
    %c64_i32 = arith.constant 64 : i32
    %28 = tpu.dynamic_rotate %25 by %c64_i32 dim 1 : vector<2x128xf32>, i32 -> vector<2x128xf32>
    %29 = vector.extract_strided_slice %28 {offsets = [0, 0], sizes = [2, 32], strides = [1, 1]} : vector<2x128xf32> to vector<2x32xf32>
    %c32_i32 = arith.constant 32 : i32
    %30 = tpu.dynamic_rotate %25 by %c32_i32 dim 1 : vector<2x128xf32>, i32 -> vector<2x128xf32>
    %31 = vector.extract_strided_slice %30 {offsets = [0, 0], sizes = [2, 32], strides = [1, 1]} : vector<2x128xf32> to vector<2x32xf32>
    %32 = arith.mulf %29, %14 : vector<2x32xf32>
    %33 = arith.mulf %27, %20 : vector<2x32xf32>
    %34 = arith.addf %32, %33 : vector<2x32xf32>
    %35 = math.tanh %34 : vector<2x32xf32>
    %36 = arith.mulf %31, %35 : vector<2x32xf32>
    %37 = arith.truncf %36 : vector<2x32xf32> to vector<2x32xbf16>
    %38 = vector.extract_strided_slice %10 {offsets = [2, 0], sizes = [2, 128], strides = [1, 1]} : vector<16x128xf32> to vector<2x128xf32>
    %cst_21 = arith.constant dense<0.000000e+00> : vector<2x128xf32>
    %39 = tpu.matmul %37, %2, %cst_21 {dimension_numbers = #tpu.dot_dimension_numbers<[1], [0], [0], [1], [0, 0, 1, 1], [], []>} : vector<2x32xbf16>, vector<32x128xbf16>, vector<2x128xf32> -> vector<2x128xf32>
    %40 = arith.addf %38, %39 : vector<2x128xf32>
    %41 = vector.extract_strided_slice %40 {offsets = [0, 0], sizes = [2, 32], strides = [1, 1]} : vector<2x128xf32> to vector<2x32xf32>
    %42 = math.tanh %41 : vector<2x32xf32>
    %43 = arith.negf %40 : vector<2x128xf32>
    %44 = math.exp %43 : vector<2x128xf32>
    %cst_22 = arith.constant 1.000000e+00 : f32
    %45 = vector.broadcast %cst_22 : f32 to vector<2x128xf32>
    %46 = arith.addf %45, %44 : vector<2x128xf32>
    %47 = arith.divf %45, %46 : vector<2x128xf32>
    %c96_i32_23 = arith.constant 96 : i32
    %48 = tpu.dynamic_rotate %47 by %c96_i32_23 dim 1 : vector<2x128xf32>, i32 -> vector<2x128xf32>
    %49 = vector.extract_strided_slice %48 {offsets = [0, 0], sizes = [2, 32], strides = [1, 1]} : vector<2x128xf32> to vector<2x32xf32>
    %c64_i32_24 = arith.constant 64 : i32
    %50 = tpu.dynamic_rotate %47 by %c64_i32_24 dim 1 : vector<2x128xf32>, i32 -> vector<2x128xf32>
    %51 = vector.extract_strided_slice %50 {offsets = [0, 0], sizes = [2, 32], strides = [1, 1]} : vector<2x128xf32> to vector<2x32xf32>
    %c32_i32_25 = arith.constant 32 : i32
    %52 = tpu.dynamic_rotate %47 by %c32_i32_25 dim 1 : vector<2x128xf32>, i32 -> vector<2x128xf32>
    %53 = vector.extract_strided_slice %52 {offsets = [0, 0], sizes = [2, 32], strides = [1, 1]} : vector<2x128xf32> to vector<2x32xf32>
    %54 = arith.mulf %51, %34 : vector<2x32xf32>
    %55 = arith.mulf %49, %42 : vector<2x32xf32>
    %56 = arith.addf %54, %55 : vector<2x32xf32>
    %57 = math.tanh %56 : vector<2x32xf32>
    %58 = arith.mulf %53, %57 : vector<2x32xf32>
    %cst_26 = arith.constant dense<0.000000e+00> : vector<2x128xf32>
    %59 = tpu.matmul %37, %3, %cst_26 {dimension_numbers = #tpu.dot_dimension_numbers<[1], [0], [0], [1], [0, 0, 1, 1], [], []>} : vector<2x32xbf16>, vector<32x128xbf16>, vector<2x128xf32> -> vector<2x128xf32>
    %cst_27 = arith.constant dense<0.000000e+00> : vector<2x128xf32>
    %60 = tpu.matmul %15, %4, %cst_27 {dimension_numbers = #tpu.dot_dimension_numbers<[1], [0], [0], [1], [0, 0, 1, 1], [], []>} : vector<2x32xbf16>, vector<32x128xbf16>, vector<2x128xf32> -> vector<2x128xf32>
    %61 = arith.addf %59, %60 : vector<2x128xf32>
    %62 = arith.addf %61, %13 : vector<2x128xf32>
    %63 = vector.extract_strided_slice %62 {offsets = [0, 0], sizes = [2, 32], strides = [1, 1]} : vector<2x128xf32> to vector<2x32xf32>
    %64 = math.tanh %63 : vector<2x32xf32>
    %65 = arith.negf %62 : vector<2x128xf32>
    %66 = math.exp %65 : vector<2x128xf32>
    %cst_28 = arith.constant 1.000000e+00 : f32
    %67 = vector.broadcast %cst_28 : f32 to vector<2x128xf32>
    %68 = arith.addf %67, %66 : vector<2x128xf32>
    %69 = arith.divf %67, %68 : vector<2x128xf32>
    %c96_i32_29 = arith.constant 96 : i32
    %70 = tpu.dynamic_rotate %69 by %c96_i32_29 dim 1 : vector<2x128xf32>, i32 -> vector<2x128xf32>
    %71 = vector.extract_strided_slice %70 {offsets = [0, 0], sizes = [2, 32], strides = [1, 1]} : vector<2x128xf32> to vector<2x32xf32>
    %c64_i32_30 = arith.constant 64 : i32
    %72 = tpu.dynamic_rotate %69 by %c64_i32_30 dim 1 : vector<2x128xf32>, i32 -> vector<2x128xf32>
    %73 = vector.extract_strided_slice %72 {offsets = [0, 0], sizes = [2, 32], strides = [1, 1]} : vector<2x128xf32> to vector<2x32xf32>
    %c32_i32_31 = arith.constant 32 : i32
    %74 = tpu.dynamic_rotate %69 by %c32_i32_31 dim 1 : vector<2x128xf32>, i32 -> vector<2x128xf32>
    %75 = vector.extract_strided_slice %74 {offsets = [0, 0], sizes = [2, 32], strides = [1, 1]} : vector<2x128xf32> to vector<2x32xf32>
    %76 = arith.mulf %73, %14 : vector<2x32xf32>
    %77 = arith.mulf %71, %64 : vector<2x32xf32>
    %78 = arith.addf %76, %77 : vector<2x32xf32>
    %79 = math.tanh %78 : vector<2x32xf32>
    %80 = arith.mulf %75, %79 : vector<2x32xf32>
    %81 = arith.truncf %58 : vector<2x32xf32> to vector<2x32xbf16>
    %82 = arith.truncf %80 : vector<2x32xf32> to vector<2x32xbf16>
    %83 = vector.extract_strided_slice %10 {offsets = [4, 0], sizes = [2, 128], strides = [1, 1]} : vector<16x128xf32> to vector<2x128xf32>
    %cst_32 = arith.constant dense<0.000000e+00> : vector<2x128xf32>
    %84 = tpu.matmul %81, %2, %cst_32 {dimension_numbers = #tpu.dot_dimension_numbers<[1], [0], [0], [1], [0, 0, 1, 1], [], []>} : vector<2x32xbf16>, vector<32x128xbf16>, vector<2x128xf32> -> vector<2x128xf32>
    %85 = arith.addf %83, %84 : vector<2x128xf32>
    %86 = vector.extract_strided_slice %85 {offsets = [0, 0], sizes = [2, 32], strides = [1, 1]} : vector<2x128xf32> to vector<2x32xf32>
    %87 = math.tanh %86 : vector<2x32xf32>
    %88 = arith.negf %85 : vector<2x128xf32>
    %89 = math.exp %88 : vector<2x128xf32>
    %cst_33 = arith.constant 1.000000e+00 : f32
    %90 = vector.broadcast %cst_33 : f32 to vector<2x128xf32>
    %91 = arith.addf %90, %89 : vector<2x128xf32>
    %92 = arith.divf %90, %91 : vector<2x128xf32>
    %c96_i32_34 = arith.constant 96 : i32
    %93 = tpu.dynamic_rotate %92 by %c96_i32_34 dim 1 : vector<2x128xf32>, i32 -> vector<2x128xf32>
    %94 = vector.extract_strided_slice %93 {offsets = [0, 0], sizes = [2, 32], strides = [1, 1]} : vector<2x128xf32> to vector<2x32xf32>
    %c64_i32_35 = arith.constant 64 : i32
    %95 = tpu.dynamic_rotate %92 by %c64_i32_35 dim 1 : vector<2x128xf32>, i32 -> vector<2x128xf32>
    %96 = vector.extract_strided_slice %95 {offsets = [0, 0], sizes = [2, 32], strides = [1, 1]} : vector<2x128xf32> to vector<2x32xf32>
    %c32_i32_36 = arith.constant 32 : i32
    %97 = tpu.dynamic_rotate %92 by %c32_i32_36 dim 1 : vector<2x128xf32>, i32 -> vector<2x128xf32>
    %98 = vector.extract_strided_slice %97 {offsets = [0, 0], sizes = [2, 32], strides = [1, 1]} : vector<2x128xf32> to vector<2x32xf32>
    %99 = arith.mulf %96, %56 : vector<2x32xf32>
    %100 = arith.mulf %94, %87 : vector<2x32xf32>
    %101 = arith.addf %99, %100 : vector<2x32xf32>
    %102 = math.tanh %101 : vector<2x32xf32>
    %103 = arith.mulf %98, %102 : vector<2x32xf32>
    %cst_37 = arith.constant dense<0.000000e+00> : vector<2x128xf32>
    %104 = tpu.matmul %81, %3, %cst_37 {dimension_numbers = #tpu.dot_dimension_numbers<[1], [0], [0], [1], [0, 0, 1, 1], [], []>} : vector<2x32xbf16>, vector<32x128xbf16>, vector<2x128xf32> -> vector<2x128xf32>
    %cst_38 = arith.constant dense<0.000000e+00> : vector<2x128xf32>
    %105 = tpu.matmul %82, %4, %cst_38 {dimension_numbers = #tpu.dot_dimension_numbers<[1], [0], [0], [1], [0, 0, 1, 1], [], []>} : vector<2x32xbf16>, vector<32x128xbf16>, vector<2x128xf32> -> vector<2x128xf32>
    %106 = arith.addf %104, %105 : vector<2x128xf32>
    %107 = arith.addf %106, %13 : vector<2x128xf32>
    %108 = vector.extract_strided_slice %107 {offsets = [0, 0], sizes = [2, 32], strides = [1, 1]} : vector<2x128xf32> to vector<2x32xf32>
    %109 = math.tanh %108 : vector<2x32xf32>
    %110 = arith.negf %107 : vector<2x128xf32>
    %111 = math.exp %110 : vector<2x128xf32>
    %cst_39 = arith.constant 1.000000e+00 : f32
    %112 = vector.broadcast %cst_39 : f32 to vector<2x128xf32>
    %113 = arith.addf %112, %111 : vector<2x128xf32>
    %114 = arith.divf %112, %113 : vector<2x128xf32>
    %c96_i32_40 = arith.constant 96 : i32
    %115 = tpu.dynamic_rotate %114 by %c96_i32_40 dim 1 : vector<2x128xf32>, i32 -> vector<2x128xf32>
    %116 = vector.extract_strided_slice %115 {offsets = [0, 0], sizes = [2, 32], strides = [1, 1]} : vector<2x128xf32> to vector<2x32xf32>
    %c64_i32_41 = arith.constant 64 : i32
    %117 = tpu.dynamic_rotate %114 by %c64_i32_41 dim 1 : vector<2x128xf32>, i32 -> vector<2x128xf32>
    %118 = vector.extract_strided_slice %117 {offsets = [0, 0], sizes = [2, 32], strides = [1, 1]} : vector<2x128xf32> to vector<2x32xf32>
    %c32_i32_42 = arith.constant 32 : i32
    %119 = tpu.dynamic_rotate %114 by %c32_i32_42 dim 1 : vector<2x128xf32>, i32 -> vector<2x128xf32>
    %120 = vector.extract_strided_slice %119 {offsets = [0, 0], sizes = [2, 32], strides = [1, 1]} : vector<2x128xf32> to vector<2x32xf32>
    %121 = arith.mulf %118, %78 : vector<2x32xf32>
    %122 = arith.mulf %116, %109 : vector<2x32xf32>
    %123 = arith.addf %121, %122 : vector<2x32xf32>
    %124 = math.tanh %123 : vector<2x32xf32>
    %125 = arith.mulf %120, %124 : vector<2x32xf32>
    %126 = arith.truncf %103 : vector<2x32xf32> to vector<2x32xbf16>
    %127 = arith.truncf %125 : vector<2x32xf32> to vector<2x32xbf16>
    %128 = vector.extract_strided_slice %10 {offsets = [6, 0], sizes = [2, 128], strides = [1, 1]} : vector<16x128xf32> to vector<2x128xf32>
    %cst_43 = arith.constant dense<0.000000e+00> : vector<2x128xf32>
    %129 = tpu.matmul %126, %2, %cst_43 {dimension_numbers = #tpu.dot_dimension_numbers<[1], [0], [0], [1], [0, 0, 1, 1], [], []>} : vector<2x32xbf16>, vector<32x128xbf16>, vector<2x128xf32> -> vector<2x128xf32>
    %130 = arith.addf %128, %129 : vector<2x128xf32>
    %131 = vector.extract_strided_slice %130 {offsets = [0, 0], sizes = [2, 32], strides = [1, 1]} : vector<2x128xf32> to vector<2x32xf32>
    %132 = math.tanh %131 : vector<2x32xf32>
    %133 = arith.negf %130 : vector<2x128xf32>
    %134 = math.exp %133 : vector<2x128xf32>
    %cst_44 = arith.constant 1.000000e+00 : f32
    %135 = vector.broadcast %cst_44 : f32 to vector<2x128xf32>
    %136 = arith.addf %135, %134 : vector<2x128xf32>
    %137 = arith.divf %135, %136 : vector<2x128xf32>
    %c96_i32_45 = arith.constant 96 : i32
    %138 = tpu.dynamic_rotate %137 by %c96_i32_45 dim 1 : vector<2x128xf32>, i32 -> vector<2x128xf32>
    %139 = vector.extract_strided_slice %138 {offsets = [0, 0], sizes = [2, 32], strides = [1, 1]} : vector<2x128xf32> to vector<2x32xf32>
    %c64_i32_46 = arith.constant 64 : i32
    %140 = tpu.dynamic_rotate %137 by %c64_i32_46 dim 1 : vector<2x128xf32>, i32 -> vector<2x128xf32>
    %141 = vector.extract_strided_slice %140 {offsets = [0, 0], sizes = [2, 32], strides = [1, 1]} : vector<2x128xf32> to vector<2x32xf32>
    %c32_i32_47 = arith.constant 32 : i32
    %142 = tpu.dynamic_rotate %137 by %c32_i32_47 dim 1 : vector<2x128xf32>, i32 -> vector<2x128xf32>
    %143 = vector.extract_strided_slice %142 {offsets = [0, 0], sizes = [2, 32], strides = [1, 1]} : vector<2x128xf32> to vector<2x32xf32>
    %144 = arith.mulf %141, %101 : vector<2x32xf32>
    %145 = arith.mulf %139, %132 : vector<2x32xf32>
    %146 = arith.addf %144, %145 : vector<2x32xf32>
    %147 = math.tanh %146 : vector<2x32xf32>
    %148 = arith.mulf %143, %147 : vector<2x32xf32>
    %cst_48 = arith.constant dense<0.000000e+00> : vector<2x128xf32>
    %149 = tpu.matmul %126, %3, %cst_48 {dimension_numbers = #tpu.dot_dimension_numbers<[1], [0], [0], [1], [0, 0, 1, 1], [], []>} : vector<2x32xbf16>, vector<32x128xbf16>, vector<2x128xf32> -> vector<2x128xf32>
    %cst_49 = arith.constant dense<0.000000e+00> : vector<2x128xf32>
    %150 = tpu.matmul %127, %4, %cst_49 {dimension_numbers = #tpu.dot_dimension_numbers<[1], [0], [0], [1], [0, 0, 1, 1], [], []>} : vector<2x32xbf16>, vector<32x128xbf16>, vector<2x128xf32> -> vector<2x128xf32>
    %151 = arith.addf %149, %150 : vector<2x128xf32>
    %152 = arith.addf %151, %13 : vector<2x128xf32>
    %153 = vector.extract_strided_slice %152 {offsets = [0, 0], sizes = [2, 32], strides = [1, 1]} : vector<2x128xf32> to vector<2x32xf32>
    %154 = math.tanh %153 : vector<2x32xf32>
    %155 = arith.negf %152 : vector<2x128xf32>
    %156 = math.exp %155 : vector<2x128xf32>
    %cst_50 = arith.constant 1.000000e+00 : f32
    %157 = vector.broadcast %cst_50 : f32 to vector<2x128xf32>
    %158 = arith.addf %157, %156 : vector<2x128xf32>
    %159 = arith.divf %157, %158 : vector<2x128xf32>
    %c96_i32_51 = arith.constant 96 : i32
    %160 = tpu.dynamic_rotate %159 by %c96_i32_51 dim 1 : vector<2x128xf32>, i32 -> vector<2x128xf32>
    %161 = vector.extract_strided_slice %160 {offsets = [0, 0], sizes = [2, 32], strides = [1, 1]} : vector<2x128xf32> to vector<2x32xf32>
    %c64_i32_52 = arith.constant 64 : i32
    %162 = tpu.dynamic_rotate %159 by %c64_i32_52 dim 1 : vector<2x128xf32>, i32 -> vector<2x128xf32>
    %163 = vector.extract_strided_slice %162 {offsets = [0, 0], sizes = [2, 32], strides = [1, 1]} : vector<2x128xf32> to vector<2x32xf32>
    %c32_i32_53 = arith.constant 32 : i32
    %164 = tpu.dynamic_rotate %159 by %c32_i32_53 dim 1 : vector<2x128xf32>, i32 -> vector<2x128xf32>
    %165 = vector.extract_strided_slice %164 {offsets = [0, 0], sizes = [2, 32], strides = [1, 1]} : vector<2x128xf32> to vector<2x32xf32>
    %166 = arith.mulf %163, %123 : vector<2x32xf32>
    %167 = arith.mulf %161, %154 : vector<2x32xf32>
    %168 = arith.addf %166, %167 : vector<2x32xf32>
    %169 = math.tanh %168 : vector<2x32xf32>
    %170 = arith.mulf %165, %169 : vector<2x32xf32>
    %171 = arith.truncf %148 : vector<2x32xf32> to vector<2x32xbf16>
    %172 = arith.truncf %170 : vector<2x32xf32> to vector<2x32xbf16>
    %173 = vector.extract_strided_slice %10 {offsets = [8, 0], sizes = [2, 128], strides = [1, 1]} : vector<16x128xf32> to vector<2x128xf32>
    %cst_54 = arith.constant dense<0.000000e+00> : vector<2x128xf32>
    %174 = tpu.matmul %171, %2, %cst_54 {dimension_numbers = #tpu.dot_dimension_numbers<[1], [0], [0], [1], [0, 0, 1, 1], [], []>} : vector<2x32xbf16>, vector<32x128xbf16>, vector<2x128xf32> -> vector<2x128xf32>
    %175 = arith.addf %173, %174 : vector<2x128xf32>
    %176 = vector.extract_strided_slice %175 {offsets = [0, 0], sizes = [2, 32], strides = [1, 1]} : vector<2x128xf32> to vector<2x32xf32>
    %177 = math.tanh %176 : vector<2x32xf32>
    %178 = arith.negf %175 : vector<2x128xf32>
    %179 = math.exp %178 : vector<2x128xf32>
    %cst_55 = arith.constant 1.000000e+00 : f32
    %180 = vector.broadcast %cst_55 : f32 to vector<2x128xf32>
    %181 = arith.addf %180, %179 : vector<2x128xf32>
    %182 = arith.divf %180, %181 : vector<2x128xf32>
    %c96_i32_56 = arith.constant 96 : i32
    %183 = tpu.dynamic_rotate %182 by %c96_i32_56 dim 1 : vector<2x128xf32>, i32 -> vector<2x128xf32>
    %184 = vector.extract_strided_slice %183 {offsets = [0, 0], sizes = [2, 32], strides = [1, 1]} : vector<2x128xf32> to vector<2x32xf32>
    %c64_i32_57 = arith.constant 64 : i32
    %185 = tpu.dynamic_rotate %182 by %c64_i32_57 dim 1 : vector<2x128xf32>, i32 -> vector<2x128xf32>
    %186 = vector.extract_strided_slice %185 {offsets = [0, 0], sizes = [2, 32], strides = [1, 1]} : vector<2x128xf32> to vector<2x32xf32>
    %c32_i32_58 = arith.constant 32 : i32
    %187 = tpu.dynamic_rotate %182 by %c32_i32_58 dim 1 : vector<2x128xf32>, i32 -> vector<2x128xf32>
    %188 = vector.extract_strided_slice %187 {offsets = [0, 0], sizes = [2, 32], strides = [1, 1]} : vector<2x128xf32> to vector<2x32xf32>
    %189 = arith.mulf %186, %146 : vector<2x32xf32>
    %190 = arith.mulf %184, %177 : vector<2x32xf32>
    %191 = arith.addf %189, %190 : vector<2x32xf32>
    %192 = math.tanh %191 : vector<2x32xf32>
    %193 = arith.mulf %188, %192 : vector<2x32xf32>
    %cst_59 = arith.constant dense<0.000000e+00> : vector<2x128xf32>
    %194 = tpu.matmul %171, %3, %cst_59 {dimension_numbers = #tpu.dot_dimension_numbers<[1], [0], [0], [1], [0, 0, 1, 1], [], []>} : vector<2x32xbf16>, vector<32x128xbf16>, vector<2x128xf32> -> vector<2x128xf32>
    %cst_60 = arith.constant dense<0.000000e+00> : vector<2x128xf32>
    %195 = tpu.matmul %172, %4, %cst_60 {dimension_numbers = #tpu.dot_dimension_numbers<[1], [0], [0], [1], [0, 0, 1, 1], [], []>} : vector<2x32xbf16>, vector<32x128xbf16>, vector<2x128xf32> -> vector<2x128xf32>
    %196 = arith.addf %194, %195 : vector<2x128xf32>
    %197 = arith.addf %196, %13 : vector<2x128xf32>
    %198 = vector.extract_strided_slice %197 {offsets = [0, 0], sizes = [2, 32], strides = [1, 1]} : vector<2x128xf32> to vector<2x32xf32>
    %199 = math.tanh %198 : vector<2x32xf32>
    %200 = arith.negf %197 : vector<2x128xf32>
    %201 = math.exp %200 : vector<2x128xf32>
    %cst_61 = arith.constant 1.000000e+00 : f32
    %202 = vector.broadcast %cst_61 : f32 to vector<2x128xf32>
    %203 = arith.addf %202, %201 : vector<2x128xf32>
    %204 = arith.divf %202, %203 : vector<2x128xf32>
    %c96_i32_62 = arith.constant 96 : i32
    %205 = tpu.dynamic_rotate %204 by %c96_i32_62 dim 1 : vector<2x128xf32>, i32 -> vector<2x128xf32>
    %206 = vector.extract_strided_slice %205 {offsets = [0, 0], sizes = [2, 32], strides = [1, 1]} : vector<2x128xf32> to vector<2x32xf32>
    %c64_i32_63 = arith.constant 64 : i32
    %207 = tpu.dynamic_rotate %204 by %c64_i32_63 dim 1 : vector<2x128xf32>, i32 -> vector<2x128xf32>
    %208 = vector.extract_strided_slice %207 {offsets = [0, 0], sizes = [2, 32], strides = [1, 1]} : vector<2x128xf32> to vector<2x32xf32>
    %c32_i32_64 = arith.constant 32 : i32
    %209 = tpu.dynamic_rotate %204 by %c32_i32_64 dim 1 : vector<2x128xf32>, i32 -> vector<2x128xf32>
    %210 = vector.extract_strided_slice %209 {offsets = [0, 0], sizes = [2, 32], strides = [1, 1]} : vector<2x128xf32> to vector<2x32xf32>
    %211 = arith.mulf %208, %168 : vector<2x32xf32>
    %212 = arith.mulf %206, %199 : vector<2x32xf32>
    %213 = arith.addf %211, %212 : vector<2x32xf32>
    %214 = math.tanh %213 : vector<2x32xf32>
    %215 = arith.mulf %210, %214 : vector<2x32xf32>
    %216 = arith.truncf %193 : vector<2x32xf32> to vector<2x32xbf16>
    %217 = arith.truncf %215 : vector<2x32xf32> to vector<2x32xbf16>
    %218 = vector.extract_strided_slice %10 {offsets = [10, 0], sizes = [2, 128], strides = [1, 1]} : vector<16x128xf32> to vector<2x128xf32>
    %cst_65 = arith.constant dense<0.000000e+00> : vector<2x128xf32>
    %219 = tpu.matmul %216, %2, %cst_65 {dimension_numbers = #tpu.dot_dimension_numbers<[1], [0], [0], [1], [0, 0, 1, 1], [], []>} : vector<2x32xbf16>, vector<32x128xbf16>, vector<2x128xf32> -> vector<2x128xf32>
    %220 = arith.addf %218, %219 : vector<2x128xf32>
    %221 = vector.extract_strided_slice %220 {offsets = [0, 0], sizes = [2, 32], strides = [1, 1]} : vector<2x128xf32> to vector<2x32xf32>
    %222 = math.tanh %221 : vector<2x32xf32>
    %223 = arith.negf %220 : vector<2x128xf32>
    %224 = math.exp %223 : vector<2x128xf32>
    %cst_66 = arith.constant 1.000000e+00 : f32
    %225 = vector.broadcast %cst_66 : f32 to vector<2x128xf32>
    %226 = arith.addf %225, %224 : vector<2x128xf32>
    %227 = arith.divf %225, %226 : vector<2x128xf32>
    %c96_i32_67 = arith.constant 96 : i32
    %228 = tpu.dynamic_rotate %227 by %c96_i32_67 dim 1 : vector<2x128xf32>, i32 -> vector<2x128xf32>
    %229 = vector.extract_strided_slice %228 {offsets = [0, 0], sizes = [2, 32], strides = [1, 1]} : vector<2x128xf32> to vector<2x32xf32>
    %c64_i32_68 = arith.constant 64 : i32
    %230 = tpu.dynamic_rotate %227 by %c64_i32_68 dim 1 : vector<2x128xf32>, i32 -> vector<2x128xf32>
    %231 = vector.extract_strided_slice %230 {offsets = [0, 0], sizes = [2, 32], strides = [1, 1]} : vector<2x128xf32> to vector<2x32xf32>
    %c32_i32_69 = arith.constant 32 : i32
    %232 = tpu.dynamic_rotate %227 by %c32_i32_69 dim 1 : vector<2x128xf32>, i32 -> vector<2x128xf32>
    %233 = vector.extract_strided_slice %232 {offsets = [0, 0], sizes = [2, 32], strides = [1, 1]} : vector<2x128xf32> to vector<2x32xf32>
    %234 = arith.mulf %231, %191 : vector<2x32xf32>
    %235 = arith.mulf %229, %222 : vector<2x32xf32>
    %236 = arith.addf %234, %235 : vector<2x32xf32>
    %237 = math.tanh %236 : vector<2x32xf32>
    %238 = arith.mulf %233, %237 : vector<2x32xf32>
    %cst_70 = arith.constant dense<0.000000e+00> : vector<2x128xf32>
    %239 = tpu.matmul %216, %3, %cst_70 {dimension_numbers = #tpu.dot_dimension_numbers<[1], [0], [0], [1], [0, 0, 1, 1], [], []>} : vector<2x32xbf16>, vector<32x128xbf16>, vector<2x128xf32> -> vector<2x128xf32>
    %cst_71 = arith.constant dense<0.000000e+00> : vector<2x128xf32>
    %240 = tpu.matmul %217, %4, %cst_71 {dimension_numbers = #tpu.dot_dimension_numbers<[1], [0], [0], [1], [0, 0, 1, 1], [], []>} : vector<2x32xbf16>, vector<32x128xbf16>, vector<2x128xf32> -> vector<2x128xf32>
    %241 = arith.addf %239, %240 : vector<2x128xf32>
    %242 = arith.addf %241, %13 : vector<2x128xf32>
    %243 = vector.extract_strided_slice %242 {offsets = [0, 0], sizes = [2, 32], strides = [1, 1]} : vector<2x128xf32> to vector<2x32xf32>
    %244 = math.tanh %243 : vector<2x32xf32>
    %245 = arith.negf %242 : vector<2x128xf32>
    %246 = math.exp %245 : vector<2x128xf32>
    %cst_72 = arith.constant 1.000000e+00 : f32
    %247 = vector.broadcast %cst_72 : f32 to vector<2x128xf32>
    %248 = arith.addf %247, %246 : vector<2x128xf32>
    %249 = arith.divf %247, %248 : vector<2x128xf32>
    %c96_i32_73 = arith.constant 96 : i32
    %250 = tpu.dynamic_rotate %249 by %c96_i32_73 dim 1 : vector<2x128xf32>, i32 -> vector<2x128xf32>
    %251 = vector.extract_strided_slice %250 {offsets = [0, 0], sizes = [2, 32], strides = [1, 1]} : vector<2x128xf32> to vector<2x32xf32>
    %c64_i32_74 = arith.constant 64 : i32
    %252 = tpu.dynamic_rotate %249 by %c64_i32_74 dim 1 : vector<2x128xf32>, i32 -> vector<2x128xf32>
    %253 = vector.extract_strided_slice %252 {offsets = [0, 0], sizes = [2, 32], strides = [1, 1]} : vector<2x128xf32> to vector<2x32xf32>
    %c32_i32_75 = arith.constant 32 : i32
    %254 = tpu.dynamic_rotate %249 by %c32_i32_75 dim 1 : vector<2x128xf32>, i32 -> vector<2x128xf32>
    %255 = vector.extract_strided_slice %254 {offsets = [0, 0], sizes = [2, 32], strides = [1, 1]} : vector<2x128xf32> to vector<2x32xf32>
    %256 = arith.mulf %253, %213 : vector<2x32xf32>
    %257 = arith.mulf %251, %244 : vector<2x32xf32>
    %258 = arith.addf %256, %257 : vector<2x32xf32>
    %259 = math.tanh %258 : vector<2x32xf32>
    %260 = arith.mulf %255, %259 : vector<2x32xf32>
    %261 = arith.truncf %238 : vector<2x32xf32> to vector<2x32xbf16>
    %262 = arith.truncf %260 : vector<2x32xf32> to vector<2x32xbf16>
    %263 = vector.extract_strided_slice %10 {offsets = [12, 0], sizes = [2, 128], strides = [1, 1]} : vector<16x128xf32> to vector<2x128xf32>
    %cst_76 = arith.constant dense<0.000000e+00> : vector<2x128xf32>
    %264 = tpu.matmul %261, %2, %cst_76 {dimension_numbers = #tpu.dot_dimension_numbers<[1], [0], [0], [1], [0, 0, 1, 1], [], []>} : vector<2x32xbf16>, vector<32x128xbf16>, vector<2x128xf32> -> vector<2x128xf32>
    %265 = arith.addf %263, %264 : vector<2x128xf32>
    %266 = vector.extract_strided_slice %265 {offsets = [0, 0], sizes = [2, 32], strides = [1, 1]} : vector<2x128xf32> to vector<2x32xf32>
    %267 = math.tanh %266 : vector<2x32xf32>
    %268 = arith.negf %265 : vector<2x128xf32>
    %269 = math.exp %268 : vector<2x128xf32>
    %cst_77 = arith.constant 1.000000e+00 : f32
    %270 = vector.broadcast %cst_77 : f32 to vector<2x128xf32>
    %271 = arith.addf %270, %269 : vector<2x128xf32>
    %272 = arith.divf %270, %271 : vector<2x128xf32>
    %c96_i32_78 = arith.constant 96 : i32
    %273 = tpu.dynamic_rotate %272 by %c96_i32_78 dim 1 : vector<2x128xf32>, i32 -> vector<2x128xf32>
    %274 = vector.extract_strided_slice %273 {offsets = [0, 0], sizes = [2, 32], strides = [1, 1]} : vector<2x128xf32> to vector<2x32xf32>
    %c64_i32_79 = arith.constant 64 : i32
    %275 = tpu.dynamic_rotate %272 by %c64_i32_79 dim 1 : vector<2x128xf32>, i32 -> vector<2x128xf32>
    %276 = vector.extract_strided_slice %275 {offsets = [0, 0], sizes = [2, 32], strides = [1, 1]} : vector<2x128xf32> to vector<2x32xf32>
    %c32_i32_80 = arith.constant 32 : i32
    %277 = tpu.dynamic_rotate %272 by %c32_i32_80 dim 1 : vector<2x128xf32>, i32 -> vector<2x128xf32>
    %278 = vector.extract_strided_slice %277 {offsets = [0, 0], sizes = [2, 32], strides = [1, 1]} : vector<2x128xf32> to vector<2x32xf32>
    %279 = arith.mulf %276, %236 : vector<2x32xf32>
    %280 = arith.mulf %274, %267 : vector<2x32xf32>
    %281 = arith.addf %279, %280 : vector<2x32xf32>
    %282 = math.tanh %281 : vector<2x32xf32>
    %283 = arith.mulf %278, %282 : vector<2x32xf32>
    %cst_81 = arith.constant dense<0.000000e+00> : vector<2x128xf32>
    %284 = tpu.matmul %261, %3, %cst_81 {dimension_numbers = #tpu.dot_dimension_numbers<[1], [0], [0], [1], [0, 0, 1, 1], [], []>} : vector<2x32xbf16>, vector<32x128xbf16>, vector<2x128xf32> -> vector<2x128xf32>
    %cst_82 = arith.constant dense<0.000000e+00> : vector<2x128xf32>
    %285 = tpu.matmul %262, %4, %cst_82 {dimension_numbers = #tpu.dot_dimension_numbers<[1], [0], [0], [1], [0, 0, 1, 1], [], []>} : vector<2x32xbf16>, vector<32x128xbf16>, vector<2x128xf32> -> vector<2x128xf32>
    %286 = arith.addf %284, %285 : vector<2x128xf32>
    %287 = arith.addf %286, %13 : vector<2x128xf32>
    %288 = vector.extract_strided_slice %287 {offsets = [0, 0], sizes = [2, 32], strides = [1, 1]} : vector<2x128xf32> to vector<2x32xf32>
    %289 = math.tanh %288 : vector<2x32xf32>
    %290 = arith.negf %287 : vector<2x128xf32>
    %291 = math.exp %290 : vector<2x128xf32>
    %cst_83 = arith.constant 1.000000e+00 : f32
    %292 = vector.broadcast %cst_83 : f32 to vector<2x128xf32>
    %293 = arith.addf %292, %291 : vector<2x128xf32>
    %294 = arith.divf %292, %293 : vector<2x128xf32>
    %c96_i32_84 = arith.constant 96 : i32
    %295 = tpu.dynamic_rotate %294 by %c96_i32_84 dim 1 : vector<2x128xf32>, i32 -> vector<2x128xf32>
    %296 = vector.extract_strided_slice %295 {offsets = [0, 0], sizes = [2, 32], strides = [1, 1]} : vector<2x128xf32> to vector<2x32xf32>
    %c64_i32_85 = arith.constant 64 : i32
    %297 = tpu.dynamic_rotate %294 by %c64_i32_85 dim 1 : vector<2x128xf32>, i32 -> vector<2x128xf32>
    %298 = vector.extract_strided_slice %297 {offsets = [0, 0], sizes = [2, 32], strides = [1, 1]} : vector<2x128xf32> to vector<2x32xf32>
    %c32_i32_86 = arith.constant 32 : i32
    %299 = tpu.dynamic_rotate %294 by %c32_i32_86 dim 1 : vector<2x128xf32>, i32 -> vector<2x128xf32>
    %300 = vector.extract_strided_slice %299 {offsets = [0, 0], sizes = [2, 32], strides = [1, 1]} : vector<2x128xf32> to vector<2x32xf32>
    %301 = arith.mulf %298, %258 : vector<2x32xf32>
    %302 = arith.mulf %296, %289 : vector<2x32xf32>
    %303 = arith.addf %301, %302 : vector<2x32xf32>
    %304 = math.tanh %303 : vector<2x32xf32>
    %305 = arith.mulf %300, %304 : vector<2x32xf32>
    %306 = arith.truncf %283 : vector<2x32xf32> to vector<2x32xbf16>
    %307 = arith.truncf %305 : vector<2x32xf32> to vector<2x32xbf16>
    %308 = vector.extract_strided_slice %10 {offsets = [14, 0], sizes = [2, 128], strides = [1, 1]} : vector<16x128xf32> to vector<2x128xf32>
    %cst_87 = arith.constant dense<0.000000e+00> : vector<2x128xf32>
    %309 = tpu.matmul %306, %2, %cst_87 {dimension_numbers = #tpu.dot_dimension_numbers<[1], [0], [0], [1], [0, 0, 1, 1], [], []>} : vector<2x32xbf16>, vector<32x128xbf16>, vector<2x128xf32> -> vector<2x128xf32>
    %310 = arith.addf %308, %309 : vector<2x128xf32>
    %311 = vector.extract_strided_slice %310 {offsets = [0, 0], sizes = [2, 32], strides = [1, 1]} : vector<2x128xf32> to vector<2x32xf32>
    %312 = math.tanh %311 : vector<2x32xf32>
    %313 = arith.negf %310 : vector<2x128xf32>
    %314 = math.exp %313 : vector<2x128xf32>
    %cst_88 = arith.constant 1.000000e+00 : f32
    %315 = vector.broadcast %cst_88 : f32 to vector<2x128xf32>
    %316 = arith.addf %315, %314 : vector<2x128xf32>
    %317 = arith.divf %315, %316 : vector<2x128xf32>
    %c96_i32_89 = arith.constant 96 : i32
    %318 = tpu.dynamic_rotate %317 by %c96_i32_89 dim 1 : vector<2x128xf32>, i32 -> vector<2x128xf32>
    %319 = vector.extract_strided_slice %318 {offsets = [0, 0], sizes = [2, 32], strides = [1, 1]} : vector<2x128xf32> to vector<2x32xf32>
    %c64_i32_90 = arith.constant 64 : i32
    %320 = tpu.dynamic_rotate %317 by %c64_i32_90 dim 1 : vector<2x128xf32>, i32 -> vector<2x128xf32>
    %321 = vector.extract_strided_slice %320 {offsets = [0, 0], sizes = [2, 32], strides = [1, 1]} : vector<2x128xf32> to vector<2x32xf32>
    %c32_i32_91 = arith.constant 32 : i32
    %322 = tpu.dynamic_rotate %317 by %c32_i32_91 dim 1 : vector<2x128xf32>, i32 -> vector<2x128xf32>
    %323 = vector.extract_strided_slice %322 {offsets = [0, 0], sizes = [2, 32], strides = [1, 1]} : vector<2x128xf32> to vector<2x32xf32>
    %324 = arith.mulf %321, %281 : vector<2x32xf32>
    %325 = arith.mulf %319, %312 : vector<2x32xf32>
    %326 = arith.addf %324, %325 : vector<2x32xf32>
    %327 = math.tanh %326 : vector<2x32xf32>
    %328 = arith.mulf %323, %327 : vector<2x32xf32>
    %cst_92 = arith.constant dense<0.000000e+00> : vector<2x128xf32>
    %329 = tpu.matmul %306, %3, %cst_92 {dimension_numbers = #tpu.dot_dimension_numbers<[1], [0], [0], [1], [0, 0, 1, 1], [], []>} : vector<2x32xbf16>, vector<32x128xbf16>, vector<2x128xf32> -> vector<2x128xf32>
    %cst_93 = arith.constant dense<0.000000e+00> : vector<2x128xf32>
    %330 = tpu.matmul %307, %4, %cst_93 {dimension_numbers = #tpu.dot_dimension_numbers<[1], [0], [0], [1], [0, 0, 1, 1], [], []>} : vector<2x32xbf16>, vector<32x128xbf16>, vector<2x128xf32> -> vector<2x128xf32>
    %331 = arith.addf %329, %330 : vector<2x128xf32>
    %332 = arith.addf %331, %13 : vector<2x128xf32>
    %333 = vector.extract_strided_slice %332 {offsets = [0, 0], sizes = [2, 32], strides = [1, 1]} : vector<2x128xf32> to vector<2x32xf32>
    %334 = math.tanh %333 : vector<2x32xf32>
    %335 = arith.negf %332 : vector<2x128xf32>
    %336 = math.exp %335 : vector<2x128xf32>
    %cst_94 = arith.constant 1.000000e+00 : f32
    %337 = vector.broadcast %cst_94 : f32 to vector<2x128xf32>
    %338 = arith.addf %337, %336 : vector<2x128xf32>
    %339 = arith.divf %337, %338 : vector<2x128xf32>
    %c96_i32_95 = arith.constant 96 : i32
    %340 = tpu.dynamic_rotate %339 by %c96_i32_95 dim 1 : vector<2x128xf32>, i32 -> vector<2x128xf32>
    %341 = vector.extract_strided_slice %340 {offsets = [0, 0], sizes = [2, 32], strides = [1, 1]} : vector<2x128xf32> to vector<2x32xf32>
    %c64_i32_96 = arith.constant 64 : i32
    %342 = tpu.dynamic_rotate %339 by %c64_i32_96 dim 1 : vector<2x128xf32>, i32 -> vector<2x128xf32>
    %343 = vector.extract_strided_slice %342 {offsets = [0, 0], sizes = [2, 32], strides = [1, 1]} : vector<2x128xf32> to vector<2x32xf32>
    %c32_i32_97 = arith.constant 32 : i32
    %344 = tpu.dynamic_rotate %339 by %c32_i32_97 dim 1 : vector<2x128xf32>, i32 -> vector<2x128xf32>
    %345 = vector.extract_strided_slice %344 {offsets = [0, 0], sizes = [2, 32], strides = [1, 1]} : vector<2x128xf32> to vector<2x32xf32>
    %346 = arith.mulf %343, %303 : vector<2x32xf32>
    %347 = arith.mulf %341, %334 : vector<2x32xf32>
    %348 = arith.addf %346, %347 : vector<2x32xf32>
    %349 = math.tanh %348 : vector<2x32xf32>
    %350 = arith.mulf %345, %349 : vector<2x32xf32>
    %351 = arith.truncf %328 : vector<2x32xf32> to vector<2x32xbf16>
    %352 = arith.truncf %350 : vector<2x32xf32> to vector<2x32xbf16>
    %cst_98 = arith.constant dense<0.000000e+00> : vector<2x128xf32>
    %353 = tpu.matmul %351, %3, %cst_98 {dimension_numbers = #tpu.dot_dimension_numbers<[1], [0], [0], [1], [0, 0, 1, 1], [], []>} : vector<2x32xbf16>, vector<32x128xbf16>, vector<2x128xf32> -> vector<2x128xf32>
    %cst_99 = arith.constant dense<0.000000e+00> : vector<2x128xf32>
    %354 = tpu.matmul %352, %4, %cst_99 {dimension_numbers = #tpu.dot_dimension_numbers<[1], [0], [0], [1], [0, 0, 1, 1], [], []>} : vector<2x32xbf16>, vector<32x128xbf16>, vector<2x128xf32> -> vector<2x128xf32>
    %355 = arith.addf %353, %354 : vector<2x128xf32>
    %356 = arith.addf %355, %13 : vector<2x128xf32>
    %357 = vector.extract_strided_slice %356 {offsets = [0, 0], sizes = [2, 32], strides = [1, 1]} : vector<2x128xf32> to vector<2x32xf32>
    %358 = math.tanh %357 : vector<2x32xf32>
    %359 = arith.negf %356 : vector<2x128xf32>
    %360 = math.exp %359 : vector<2x128xf32>
    %cst_100 = arith.constant 1.000000e+00 : f32
    %361 = vector.broadcast %cst_100 : f32 to vector<2x128xf32>
    %362 = arith.addf %361, %360 : vector<2x128xf32>
    %363 = arith.divf %361, %362 : vector<2x128xf32>
    %c96_i32_101 = arith.constant 96 : i32
    %364 = tpu.dynamic_rotate %363 by %c96_i32_101 dim 1 : vector<2x128xf32>, i32 -> vector<2x128xf32>
    %365 = vector.extract_strided_slice %364 {offsets = [0, 0], sizes = [2, 32], strides = [1, 1]} : vector<2x128xf32> to vector<2x32xf32>
    %c64_i32_102 = arith.constant 64 : i32
    %366 = tpu.dynamic_rotate %363 by %c64_i32_102 dim 1 : vector<2x128xf32>, i32 -> vector<2x128xf32>
    %367 = vector.extract_strided_slice %366 {offsets = [0, 0], sizes = [2, 32], strides = [1, 1]} : vector<2x128xf32> to vector<2x32xf32>
    %c32_i32_103 = arith.constant 32 : i32
    %368 = tpu.dynamic_rotate %363 by %c32_i32_103 dim 1 : vector<2x128xf32>, i32 -> vector<2x128xf32>
    %369 = vector.extract_strided_slice %368 {offsets = [0, 0], sizes = [2, 32], strides = [1, 1]} : vector<2x128xf32> to vector<2x32xf32>
    %370 = arith.mulf %367, %348 : vector<2x32xf32>
    %371 = arith.mulf %365, %358 : vector<2x32xf32>
    %372 = arith.addf %370, %371 : vector<2x32xf32>
    %373 = math.tanh %372 : vector<2x32xf32>
    %374 = arith.mulf %369, %373 : vector<2x32xf32>
    %375 = vector.shape_cast %80 : vector<2x32xf32> to vector<2x1x32xf32>
    %376 = vector.shape_cast %125 : vector<2x32xf32> to vector<2x1x32xf32>
    %377 = vector.shape_cast %170 : vector<2x32xf32> to vector<2x1x32xf32>
    %378 = vector.shape_cast %215 : vector<2x32xf32> to vector<2x1x32xf32>
    %379 = vector.shape_cast %260 : vector<2x32xf32> to vector<2x1x32xf32>
    %380 = vector.shape_cast %305 : vector<2x32xf32> to vector<2x1x32xf32>
    %381 = vector.shape_cast %350 : vector<2x32xf32> to vector<2x1x32xf32>
    %382 = vector.shape_cast %374 : vector<2x32xf32> to vector<2x1x32xf32>
    %383 = tpu.concatenate %375, %376, %377, %378, %379, %380, %381, %382 in 1 : vector<2x1x32xf32>, vector<2x1x32xf32>, vector<2x1x32xf32>, vector<2x1x32xf32>, vector<2x1x32xf32>, vector<2x1x32xf32>, vector<2x1x32xf32>, vector<2x1x32xf32> -> vector<2x8x32xf32>
    %384 = vector.shape_cast %1 : vector<2x32xf32> to vector<2x1x32xf32>
    %385 = vector.broadcast %384 : vector<2x1x32xf32> to vector<2x8x32xf32>
    %386 = arith.mulf %383, %385 : vector<2x8x32xf32>
    %cst_104 = arith.constant dense<0.000000e+00> : vector<2x8xf32>
    %387 = vector.multi_reduction <add>, %386, %cst_104 [2] : vector<2x8x32xf32> to vector<2x8xf32>
    %388 = arith.mulf %387, %0 : vector<2x8xf32>
    %389 = math.exp %388 : vector<2x8xf32>
    %390 = arith.mulf %389, %0 : vector<2x8xf32>
    %cst_105 = arith.constant dense<0.000000e+00> : vector<2xf32>
    %391 = vector.multi_reduction <add>, %390, %cst_105 [1] : vector<2x8xf32> to vector<2xf32>
    %392 = vector.shape_cast %391 : vector<2xf32> to vector<2x1xf32>
    %393 = arith.mulf %388, %390 : vector<2x8xf32>
    %cst_106 = arith.constant dense<0.000000e+00> : vector<2xf32>
    %394 = vector.multi_reduction <add>, %393, %cst_106 [1] : vector<2x8xf32> to vector<2xf32>
    %395 = vector.shape_cast %394 : vector<2xf32> to vector<2x1xf32>
    %396 = arith.divf %395, %392 : vector<2x1xf32>
    %397 = arith.mulf %372, %1 : vector<2x32xf32>
    %cst_107 = arith.constant dense<0.000000e+00> : vector<2xf32>
    %398 = vector.multi_reduction <add>, %397, %cst_107 [1] : vector<2x32xf32> to vector<2xf32>
    %399 = vector.shape_cast %398 : vector<2xf32> to vector<2x1xf32>
    %cst_108 = arith.constant 5.000000e-01 : f32
    %400 = vector.broadcast %cst_108 : f32 to vector<2x1xf32>
    %401 = arith.mulf %396, %400 : vector<2x1xf32>
    %cst_109 = arith.constant 5.000000e-01 : f32
    %402 = vector.broadcast %cst_109 : f32 to vector<2x1xf32>
    %403 = arith.mulf %399, %402 : vector<2x1xf32>
    %404 = arith.addf %401, %403 : vector<2x1xf32>
    %c0_110 = arith.constant 0 : index
    %c0_111 = arith.constant 0 : index
    %405 = vector.load %arg10[%c0_110, %c0_111] : memref<2x1xf32, #tpu.memory_space<vmem>>, vector<2x1xf32>
    tpu.vector_store %arg10[%c0_110, %c0_111], %404 {strides = array<i32>} : memref<2x1xf32, #tpu.memory_space<vmem>>, vector<2x1xf32>,
    return
  }
  func.func @transform_0(%arg0: i32) -> (i32, i32) {
    %c0_i32 = arith.constant 0 : i32
    %c0_i32_0 = arith.constant 0 : i32
    %c0_i32_1 = arith.constant 0 : i32
    return %c0_i32, %c0_i32_0 : i32, i32
  }
  func.func @transform_1(%arg0: i32) -> (i32, i32) {
    %c0_i32 = arith.constant 0 : i32
    %c0_i32_0 = arith.constant 0 : i32
    %c0_i32_1 = arith.constant 0 : i32
    return %c0_i32, %c0_i32_0 : i32, i32
  }
  func.func @transform_2(%arg0: i32) -> (i32, i32) {
    %c0_i32 = arith.constant 0 : i32
    %c0_i32_0 = arith.constant 0 : i32
    %c0_i32_1 = arith.constant 0 : i32
    return %c0_i32, %c0_i32_0 : i32, i32
  }
  func.func @transform_3(%arg0: i32) -> (i32, i32) {
    %c0_i32 = arith.constant 0 : i32
    %c0_i32_0 = arith.constant 0 : i32
    %c0_i32_1 = arith.constant 0 : i32
    return %c0_i32, %c0_i32_0 : i32, i32
  }
  func.func @transform_4(%arg0: i32) -> (i32, i32) {
    %c0_i32 = arith.constant 0 : i32
    %c0_i32_0 = arith.constant 0 : i32
    %c0_i32_1 = arith.constant 0 : i32
    return %c0_i32, %c0_i32_0 : i32, i32
  }
  func.func @transform_5(%arg0: i32) -> (i32, i32) {
    %c0_i32 = arith.constant 0 : i32
    %c0_i32_0 = arith.constant 0 : i32
    %c0_i32_1 = arith.constant 0 : i32
    return %c0_i32, %c0_i32_0 : i32, i32
  }
  func.func @transform_6(%arg0: i32) -> (i32, i32) {
    %c0_i32 = arith.constant 0 : i32
    %c0_i32_0 = arith.constant 0 : i32
    %c0_i32_1 = arith.constant 0 : i32
    return %c0_i32, %c0_i32_0 : i32, i32
  }
  func.func @transform_7(%arg0: i32) -> (i32, i32) {
    %c0_i32 = arith.constant 0 : i32
    %c0_i32_0 = arith.constant 0 : i32
    %c0_i32_1 = arith.constant 0 : i32
    return %c0_i32, %c0_i32_0 : i32, i32
  }
  func.func @transform_8(%arg0: i32) -> (i32, i32) {
    %c0_i32 = arith.constant 0 : i32
    %c0_i32_0 = arith.constant 0 : i32
    %c0_i32_1 = arith.constant 0 : i32
    return %c0_i32, %c0_i32_0 : i32, i32
  }
  func.func @transform_9(%arg0: i32) -> (i32, i32) {
    %c0_i32 = arith.constant 0 : i32
    %c0_i32_0 = arith.constant 0 : i32
    %c0_i32_1 = arith.constant 0 : i32
    return %c0_i32, %c0_i32_0 : i32, i32
  }
}

</mosaic_0001>

<llo_original>
// kernel: tpu_custom_call.1
$region0: #{tpu_custom_call.1}
  #allocation0 [shape = 'u32[]', space=smem, size = 0x4, offset = 0x4, fixed_abs, tag = 'smem constant byte address 0x4 - core index']
  #allocation1 [shape = 'u32[144,128]{1,0:T(1,128)}', space=vmem, size = 0x12000, scoped, tag = 'internal scratch']
  %s0 = inlined_call_operand.hbm [shape: bf16[16,32], index: 0, kind: input, shape index: {}]
  %s1 = inlined_call_operand.vmem [shape: f32[2,8], index: 1, kind: input, shape index: {}]
  %s2 = inlined_call_operand.vmem [shape: f32[2,32], index: 2, kind: input, shape index: {}]
  %s3 = inlined_call_operand.hbm [shape: bf16[32,128], index: 3, kind: input, shape index: {}]
  %s4 = inlined_call_operand.hbm [shape: bf16[32,128], index: 4, kind: input, shape index: {}]
  %s5 = inlined_call_operand.vmem [shape: f32[1,128], index: 5, kind: input, shape index: {}]
  %s6 = inlined_call_operand.vmem [shape: bf16[32,128], index: 6, kind: input, shape index: {}]
  %s7 = inlined_call_operand.hbm [shape: bf16[32,128], index: 7, kind: input, shape index: {}]
  %s8 = inlined_call_operand.vmem [shape: f32[1,128], index: 8, kind: input, shape index: {}]
  %s9 = inlined_call_operand.vmem [shape: f32[2,1], index: 9, kind: output, shape index: {}]
  %s10 = sld [smem:[#allocation0]]
  $region62: #{tpu_custom_call.1} parent=0
    _
  %s12 = ssub.s32 1, %s10
  %s13 = scalar_select 0, %s12, %s10
  $region1: #{tpu_custom_call.1} parent=0
    #allocation2 [shape = 'u8[4096]{0}', space=vmem, size = 0x1000, scoped, tag = 'input window, operand 0, single buffered']
    #allocation3 [shape = 's32[1]{0}', space=sflag, size = 0x4, scoped, tag = 'scoped memory for tpu_custom_call.1']
    #allocation4 [shape = 'u8[8192]{0}', space=vmem, size = 0x2000, scoped, tag = 'input window, operand 3, single buffered']
    #allocation5 [shape = 's32[1]{0}', space=sflag, size = 0x4, scoped, tag = 'scoped memory for tpu_custom_call.1']
    #allocation6 [shape = 'u8[8192]{0}', space=vmem, size = 0x2000, scoped, tag = 'input window, operand 4, single buffered']
    #allocation7 [shape = 'u8[8192]{0}', space=vmem, size = 0x2000, scoped, tag = 'input window, operand 7, single buffered']
    #allocation8 [shape = 's32[1]{0}', space=sflag, size = 0x4, scoped, tag = 'scoped memory for tpu_custom_call.1']
    %14 = vsyncpa [#allocation3], 0
    %15 = vsyncpa [#allocation5], 0
    %16 = vsyncpa [#allocation8], 0
    // Predicated region
    $region2: #{tpu_custom_call.1} parent=1 // pred_check
      _
    $region3: #{tpu_custom_call.1} parent=1 // pred_check_branch
      %18 = sbr.rel (0) target = $region5
    $region4: #{tpu_custom_call.1} parent=1 // pred_region
      %s20 = ssub.s32 128, 128
      %21 = vsyncadd [#allocation3], %s20
      %s22 = sshll.u32 [#allocation2], 4
      %s23 = int_to_ptr.vmem [resolvable:$true] %s22
      %28 = dma.hbm_to_vmem [thread:$0]  %s0, 128, %s23, [#allocation3], 64, 64, 4
    $region5: #{tpu_custom_call.1} parent=1 // pred_fallthru
      _
    // Predicated region
    $region6: #{tpu_custom_call.1} parent=1 // pred_check
      _
    $region7: #{tpu_custom_call.1} parent=1 // pred_check_branch
      %30 = sbr.rel (0) target = $region9
    $region8: #{tpu_custom_call.1} parent=1 // pred_region
      _
    $region9: #{tpu_custom_call.1} parent=1 // pred_fallthru
      _
    // Predicated region
    $region10: #{tpu_custom_call.1} parent=1 // pred_check
      _
    $region11: #{tpu_custom_call.1} parent=1 // pred_check_branch
      %32 = sbr.rel (0) target = $region13
    $region12: #{tpu_custom_call.1} parent=1 // pred_region
      _
    $region13: #{tpu_custom_call.1} parent=1 // pred_fallthru
      _
    // Predicated region
    $region14: #{tpu_custom_call.1} parent=1 // pred_check
      _
    $region15: #{tpu_custom_call.1} parent=1 // pred_check_branch
      %34 = sbr.rel (0) target = $region17
    $region16: #{tpu_custom_call.1} parent=1 // pred_region
      %s36 = ssub.s32 256, 256
      %37 = vsyncadd [#allocation5], %s36
      %s38 = sshll.u32 [#allocation4], 4
      %s39 = int_to_ptr.vmem [resolvable:$true] %s38
      %44 = dma.hbm_to_vmem [thread:$0]  %s3, 256, %s39, [#allocation5], 64, 64, 4
    $region17: #{tpu_custom_call.1} parent=1 // pred_fallthru
      _
    // Predicated region
    $region18: #{tpu_custom_call.1} parent=1 // pred_check
      _
    $region19: #{tpu_custom_call.1} parent=1 // pred_check_branch
      %46 = sbr.rel (0) target = $region21
    $region20: #{tpu_custom_call.1} parent=1 // pred_region
      %s48 = ssub.s32 256, 256
      %49 = vsyncadd [#allocation5], %s48
      %s50 = sshll.u32 [#allocation6], 4
      %s51 = int_to_ptr.vmem [resolvable:$true] %s50
      %56 = dma.hbm_to_vmem [thread:$0]  %s4, 256, %s51, [#allocation5], 64, 64, 4
    $region21: #{tpu_custom_call.1} parent=1 // pred_fallthru
      _
    // Predicated region
    $region22: #{tpu_custom_call.1} parent=1 // pred_check
      _
    $region23: #{tpu_custom_call.1} parent=1 // pred_check_branch
      %58 = sbr.rel (0) target = $region25
    $region24: #{tpu_custom_call.1} parent=1 // pred_region
      _
    $region25: #{tpu_custom_call.1} parent=1 // pred_fallthru
      _
    // Predicated region
    $region26: #{tpu_custom_call.1} parent=1 // pred_check
      _
    $region27: #{tpu_custom_call.1} parent=1 // pred_check_branch
      %60 = sbr.rel (0) target = $region29
    $region28: #{tpu_custom_call.1} parent=1 // pred_region
      _
    $region29: #{tpu_custom_call.1} parent=1 // pred_fallthru
      _
    // Predicated region
    $region30: #{tpu_custom_call.1} parent=1 // pred_check
      _
    $region31: #{tpu_custom_call.1} parent=1 // pred_check_branch
      %62 = sbr.rel (0) target = $region33
    $region32: #{tpu_custom_call.1} parent=1 // pred_region
      %s64 = ssub.s32 256, 256
      %65 = vsyncadd [#allocation8], %s64
      %s66 = sshll.u32 [#allocation7], 4
      %s67 = int_to_ptr.vmem [resolvable:$true] %s66
      %72 = dma.hbm_to_vmem [thread:$0]  %s7, 256, %s67, [#allocation8], 64, 64, 4
    $region33: #{tpu_custom_call.1} parent=1 // pred_fallthru
      _
    // Predicated region
    $region34: #{tpu_custom_call.1} parent=1 // pred_check
      _
    $region35: #{tpu_custom_call.1} parent=1 // pred_check_branch
      %74 = sbr.rel (0) target = $region37
    $region36: #{tpu_custom_call.1} parent=1 // pred_region
      _
    $region37: #{tpu_custom_call.1} parent=1 // pred_fallthru
      _
    // Predicated region
    $region38: #{tpu_custom_call.1} parent=1 // pred_check
      _
    $region39: #{tpu_custom_call.1} parent=1 // pred_check_branch
      %76 = sbr.rel (0) target = $region41
    $region40: #{tpu_custom_call.1} parent=1 // pred_region
      %77 = dma.done [#allocation3], 128
    $region41: #{tpu_custom_call.1} parent=1 // pred_fallthru
      _
    // Predicated region
    $region42: #{tpu_custom_call.1} parent=1 // pred_check
      _
    $region43: #{tpu_custom_call.1} parent=1 // pred_check_branch
      %79 = sbr.rel (0) target = $region45
    $region44: #{tpu_custom_call.1} parent=1 // pred_region
      %80 = dma.done [#allocation5], 256
    $region45: #{tpu_custom_call.1} parent=1 // pred_fallthru
      _
    // Predicated region
    $region46: #{tpu_custom_call.1} parent=1 // pred_check
      _
    $region47: #{tpu_custom_call.1} parent=1 // pred_check_branch
      %82 = sbr.rel (0) target = $region49
    $region48: #{tpu_custom_call.1} parent=1 // pred_region
      %83 = dma.done [#allocation5], 256
    $region49: #{tpu_custom_call.1} parent=1 // pred_fallthru
      _
    // Predicated region
    $region50: #{tpu_custom_call.1} parent=1 // pred_check
      _
    $region51: #{tpu_custom_call.1} parent=1 // pred_check_branch
      %85 = sbr.rel (0) target = $region53
    $region52: #{tpu_custom_call.1} parent=1 // pred_region
      %86 = dma.done [#allocation8], 256
    $region53: #{tpu_custom_call.1} parent=1 // pred_fallthru
      _
    %v88 = vld [vmem:[%s1] sm:$0x3]
    %v89 = vld [vmem:[%s2] sm:$0x3]
    %v90 = vld [vmem:[#allocation6] sm:$0xf]
    %v91 = vld [vmem:[#allocation6 + $0x4] sm:$0xf]
    %v92 = vld [vmem:[#allocation6 + $0x8] sm:$0xf]
    %v93 = vld [vmem:[#allocation6 + $0xc] sm:$0xf]
    %v94 = vld [vmem:[%s6] sm:$0xf]
    %v95 = vld [vmem:[%s6 + $0x4] sm:$0xf]
    %v96 = vld [vmem:[%s6 + $0x8] sm:$0xf]
    %v97 = vld [vmem:[%s6 + $0xc] sm:$0xf]
    %v98 = vld [vmem:[#allocation7] sm:$0xf]
    %v99 = vld [vmem:[#allocation7 + $0x4] sm:$0xf]
    %v100 = vld [vmem:[#allocation7 + $0x8] sm:$0xf]
    %v101 = vld [vmem:[#allocation7 + $0xc] sm:$0xf]
    %v102 = vld [vmem:[#allocation2] sm:$0xf]
    %v103 = vld [vmem:[#allocation2 + $0x4] sm:$0xf]
    %v104 = vld [vmem:[#allocation4] sm:$0xf]
    %v105 = vld [vmem:[#allocation4 + $0x4] sm:$0xf]
    %v106 = vld [vmem:[#allocation4 + $0x8] sm:$0xf]
    %v107 = vld [vmem:[#allocation4 + $0xc] sm:$0xf]
    %v108 = vld [vmem:[%s5] sm:$0x1]
    %v110 = vlaneseq
    %v111 = vshrl.u32 %v110, 7
    %v112 = vsub.s32 0, %v111
    %v113 = vrot.slane %v108, %v112
    %v117 = vunpack.c.l.b16 %v102
    %v118 = vunpack.c.l.b16 %v103
    %v119 = vpack.c.b16 %v118, %v117
    %v124 = vunpack.c.l.b16 %v104
    %v125 = vunpack.c.l.b16 %v105
    %v126 = vunpack.c.l.b16 %v106
    %v127 = vunpack.c.l.b16 %v107
    %v128 = vpack.c.b16 %v125, %v124
    %v129 = vpack.c.b16 %v127, %v126
    %vm132 = vcmask 261120
    %v134 = vsel %vm132, %v119, 0
    %136 = vmatprep.subr.bf16.mxu0 0
    %137 = vmatpush1.bf16.msra.mxu0 %v128
    %138 = vmatprep.subr.bf16.mxu0 0
    %139 = vmatpush1.bf16.msra.mxu0 %v129
    %140 = vmatprep.subr.bf16.mxu0 0
    %141 = vmatpush1.bf16.msra.mxu0 0
    %142 = vmatprep.subr.bf16.mxu0 0
    %143 = vmatpush1.bf16.msra.mxu0 0
    %144 = vmatprep.subr.bf16.mxu0 0
    %145 = vmatpush1.bf16.msra.mxu0 0
    %146 = vmatprep.subr.bf16.mxu0 0
    %147 = vmatpush1.bf16.msra.mxu0 0
    %148 = vmatprep.subr.bf16.mxu0 0
    %149 = vmatpush1.bf16.msra.mxu0 0
    %150 = vmatprep.subr.bf16.mxu0 0
    %151 = vmatpush1.bf16.msra.mxu0 0
    %152 = vmatprep.subr.bf16.mxu0 0
    %153 = vmatpush1.bf16.msra.mxu0 0
    %154 = vmatprep.subr.bf16.mxu0 0
    %155 = vmatpush1.bf16.msra.mxu0 0
    %156 = vmatprep.subr.bf16.mxu0 0
    %157 = vmatpush1.bf16.msra.mxu0 0
    %158 = vmatprep.subr.bf16.mxu0 0
    %159 = vmatpush1.bf16.msra.mxu0 0
    %160 = vmatprep.subr.bf16.mxu0 0
    %161 = vmatpush1.bf16.msra.mxu0 0
    %162 = vmatprep.subr.bf16.mxu0 0
    %163 = vmatpush1.bf16.msra.mxu0 0
    %164 = vmatprep.subr.bf16.mxu0 0
    %165 = vmatpush1.bf16.msra.mxu0 0
    %166 = vmatprep.subr.bf16.mxu0 0
    %167 = vmatpush1.bf16.msra.mxu0 0
    %168 = vmatprep.mubr.bf16.mxu0 0
    %169 = vmatmul.mubr.bf16.gmra.mrb[0].mxu0 %v134
    %v170 = vpop.f32.mrb[0].mxu0
    %v171 = vadd.f32 %v113, %v170
    %v172 = vpop.f32.mrb[0].mxu0
    %v173 = vpop.f32.mrb[0].mxu0
    %v174 = vadd.f32 %v113, %v173
    %v175 = vpop.f32.mrb[0].mxu0
    %176 = vdwg.mxu0
    %v177 = vld [vmem:[%s8] sm:$0x1]
    %v179 = vlaneseq
    %v180 = vshrl.u32 %v179, 7
    %v181 = vsub.s32 0, %v180
    %v182 = vrot.slane %v177, %v181
    %v188 = vunpack.c.l.b16 %v90
    %v189 = vunpack.c.l.b16 %v91
    %v190 = vunpack.c.l.b16 %v92
    %v191 = vunpack.c.l.b16 %v93
    %v192 = vpack.c.b16 %v189, %v188
    %v193 = vpack.c.b16 %v191, %v190
    %v197 = vsel %vm132, 0, 0
    %199 = vmatprep.subr.bf16.mxu0 0
    %200 = vmatpush1.bf16.msra.mxu0 %v192
    %201 = vmatprep.subr.bf16.mxu0 0
    %202 = vmatpush1.bf16.msra.mxu0 %v193
    %203 = vmatprep.subr.bf16.mxu0 0
    %204 = vmatpush1.bf16.msra.mxu0 0
    %205 = vmatprep.subr.bf16.mxu0 0
    %206 = vmatpush1.bf16.msra.mxu0 0
    %207 = vmatprep.subr.bf16.mxu0 0
    %208 = vmatpush1.bf16.msra.mxu0 0
    %209 = vmatprep.subr.bf16.mxu0 0
    %210 = vmatpush1.bf16.msra.mxu0 0
    %211 = vmatprep.subr.bf16.mxu0 0
    %212 = vmatpush1.bf16.msra.mxu0 0
    %213 = vmatprep.subr.bf16.mxu0 0
    %214 = vmatpush1.bf16.msra.mxu0 0
    %215 = vmatprep.subr.bf16.mxu0 0
    %216 = vmatpush1.bf16.msra.mxu0 0
    %217 = vmatprep.subr.bf16.mxu0 0
    %218 = vmatpush1.bf16.msra.mxu0 0
    %219 = vmatprep.subr.bf16.mxu0 0
    %220 = vmatpush1.bf16.msra.mxu0 0
    %221 = vmatprep.subr.bf16.mxu0 0
    %222 = vmatpush1.bf16.msra.mxu0 0
    %223 = vmatprep.subr.bf16.mxu0 0
    %224 = vmatpush1.bf16.msra.mxu0 0
    %225 = vmatprep.subr.bf16.mxu0 0
    %226 = vmatpush1.bf16.msra.mxu0 0
    %227 = vmatprep.subr.bf16.mxu0 0
    %228 = vmatpush1.bf16.msra.mxu0 0
    %229 = vmatprep.subr.bf16.mxu0 0
    %230 = vmatpush1.bf16.msra.mxu0 0
    %231 = vmatprep.mubr.bf16.mxu0 0
    %232 = vmatmul.mubr.bf16.gmra.mrb[0].mxu0 %v197
    %v233 = vpop.f32.mrb[0].mxu0
    %v234 = vadd.f32 0.0, %v233
    %v235 = vpop.f32.mrb[0].mxu0
    %v236 = vpop.f32.mrb[0].mxu0
    %v237 = vpop.f32.mrb[0].mxu0
    %238 = vdwg.mxu0
    %v239 = vadd.f32 %v171, %v234
    %v240 = vtanh.pop %v239
    %v241 = vxor.u32 %v239, 2147483648
    %v242 = vmul.f32 %v241, 1.442695
    %v243 = vpow.pop %v242
    %v244 = vadd.f32 %v243, 1.0
    %v245 = vrcp.pop %v244
    %v246 = vmul.f32 1.0, %v245
    %247 = vrot.lane.b32.xlu0 %v246, 96
    %v248 = vpop.permute.xlu0 %247
    %249 = vrot.lane.b32.xlu0 %v246, 64
    %v250 = vpop.permute.xlu0 %249
    %251 = vrot.lane.b32.xlu0 %v246, 32
    %v252 = vpop.permute.xlu0 %251
    %v253 = vmul.f32 %v250, 0.0
    %v254 = vmul.f32 %v248, %v240
    %v255 = vadd.f32 %v253, %v254
    %v256 = vtanh.pop %v255
    %v257 = vmul.f32 %v252, %v256
    %v258 = vpack.c.bf16 %v257, %v257
    %v260 = vsel %vm132, %v258, 0
    %262 = vmatprep.subr.bf16.mxu0 0
    %263 = vmatpush1.bf16.msra.mxu0 %v192
    %264 = vmatprep.subr.bf16.mxu0 0
    %265 = vmatpush1.bf16.msra.mxu0 %v193
    %266 = vmatprep.subr.bf16.mxu0 0
    %267 = vmatpush1.bf16.msra.mxu0 0
    %268 = vmatprep.subr.bf16.mxu0 0
    %269 = vmatpush1.bf16.msra.mxu0 0
    %270 = vmatprep.subr.bf16.mxu0 0
    %271 = vmatpush1.bf16.msra.mxu0 0
    %272 = vmatprep.subr.bf16.mxu0 0
    %273 = vmatpush1.bf16.msra.mxu0 0
    %274 = vmatprep.subr.bf16.mxu0 0
    %275 = vmatpush1.bf16.msra.mxu0 0
    %276 = vmatprep.subr.bf16.mxu0 0
    %277 = vmatpush1.bf16.msra.mxu0 0
    %278 = vmatprep.subr.bf16.mxu0 0
    %279 = vmatpush1.bf16.msra.mxu0 0
    %280 = vmatprep.subr.bf16.mxu0 0
    %281 = vmatpush1.bf16.msra.mxu0 0
    %282 = vmatprep.subr.bf16.mxu0 0
    %283 = vmatpush1.bf16.msra.mxu0 0
    %284 = vmatprep.subr.bf16.mxu0 0
    %285 = vmatpush1.bf16.msra.mxu0 0
    %286 = vmatprep.subr.bf16.mxu0 0
    %287 = vmatpush1.bf16.msra.mxu0 0
    %288 = vmatprep.subr.bf16.mxu0 0
    %289 = vmatpush1.bf16.msra.mxu0 0
    %290 = vmatprep.subr.bf16.mxu0 0
    %291 = vmatpush1.bf16.msra.mxu0 0
    %292 = vmatprep.subr.bf16.mxu0 0
    %293 = vmatpush1.bf16.msra.mxu0 0
    %294 = vmatprep.mubr.bf16.mxu0 0
    %295 = vmatmul.mubr.bf16.gmra.mrb[0].mxu0 %v260
    %v296 = vpop.f32.mrb[0].mxu0
    %v297 = vadd.f32 0.0, %v296
    %v298 = vpop.f32.mrb[0].mxu0
    %v299 = vpop.f32.mrb[0].mxu0
    %v300 = vpop.f32.mrb[0].mxu0
    %301 = vdwg.mxu0
    %v303 = vrot.slane %v297, 6
    %v305 = vadd.f32 %v171, %v303
    %v306 = vtanh.pop %v305
    %v307 = vxor.u32 %v305, 2147483648
    %v308 = vmul.f32 %v307, 1.442695
    %v309 = vpow.pop %v308
    %v310 = vadd.f32 %v309, 1.0
    %v311 = vrcp.pop %v310
    %v312 = vmul.f32 1.0, %v311
    %v314 = vrot.slane %v312, 2
    %316 = vrot.lane.b32.xlu0 %v314, 96
    %v317 = vpop.permute.xlu0 %316
    %318 = vrot.lane.b32.xlu0 %v314, 64
    %v319 = vpop.permute.xlu0 %318
    %320 = vrot.lane.b32.xlu0 %v314, 32
    %v321 = vpop.permute.xlu0 %320
    %v322 = vmul.f32 %v319, %v255
    %v324 = vrot.slane %v306, 2
    %v326 = vmul.f32 %v317, %v324
    %v327 = vadd.f32 %v322, %v326
    %v328 = vtanh.pop %v327
    %v329 = vmul.f32 %v321, %v328
    %v334 = vunpack.c.l.b16 %v98
    %v335 = vunpack.c.l.b16 %v99
    %v336 = vunpack.c.l.b16 %v100
    %v337 = vunpack.c.l.b16 %v101
    %v338 = vpack.c.b16 %v335, %v334
    %v339 = vpack.c.b16 %v337, %v336
    %342 = vmatprep.subr.bf16.mxu0 0
    %343 = vmatpush1.bf16.msra.mxu0 %v338
    %344 = vmatprep.subr.bf16.mxu0 0
    %345 = vmatpush1.bf16.msra.mxu0 %v339
    %346 = vmatprep.subr.bf16.mxu0 0
    %347 = vmatpush1.bf16.msra.mxu0 0
    %348 = vmatprep.subr.bf16.mxu0 0
    %349 = vmatpush1.bf16.msra.mxu0 0
    %350 = vmatprep.subr.bf16.mxu0 0
    %351 = vmatpush1.bf16.msra.mxu0 0
    %352 = vmatprep.subr.bf16.mxu0 0
    %353 = vmatpush1.bf16.msra.mxu0 0
    %354 = vmatprep.subr.bf16.mxu0 0
    %355 = vmatpush1.bf16.msra.mxu0 0
    %356 = vmatprep.subr.bf16.mxu0 0
    %357 = vmatpush1.bf16.msra.mxu0 0
    %358 = vmatprep.subr.bf16.mxu0 0
    %359 = vmatpush1.bf16.msra.mxu0 0
    %360 = vmatprep.subr.bf16.mxu0 0
    %361 = vmatpush1.bf16.msra.mxu0 0
    %362 = vmatprep.subr.bf16.mxu0 0
    %363 = vmatpush1.bf16.msra.mxu0 0
    %364 = vmatprep.subr.bf16.mxu0 0
    %365 = vmatpush1.bf16.msra.mxu0 0
    %366 = vmatprep.subr.bf16.mxu0 0
    %367 = vmatpush1.bf16.msra.mxu0 0
    %368 = vmatprep.subr.bf16.mxu0 0
    %369 = vmatpush1.bf16.msra.mxu0 0
    %370 = vmatprep.subr.bf16.mxu0 0
    %371 = vmatpush1.bf16.msra.mxu0 0
    %372 = vmatprep.subr.bf16.mxu0 0
    %373 = vmatpush1.bf16.msra.mxu0 0
    %374 = vmatprep.mubr.bf16.mxu0 0
    %375 = vmatmul.mubr.bf16.gmra.mrb[0].mxu0 %v197
    %v376 = vpop.f32.mrb[0].mxu0
    %v377 = vadd.f32 0.0, %v376
    %v378 = vpop.f32.mrb[0].mxu0
    %v379 = vpop.f32.mrb[0].mxu0
    %v380 = vpop.f32.mrb[0].mxu0
    %381 = vdwg.mxu0
    %v386 = vunpack.c.l.b16 %v94
    %v387 = vunpack.c.l.b16 %v95
    %v388 = vunpack.c.l.b16 %v96
    %v389 = vunpack.c.l.b16 %v97
    %v390 = vpack.c.b16 %v387, %v386
    %v391 = vpack.c.b16 %v389, %v388
    %394 = vmatprep.subr.bf16.mxu0 0
    %395 = vmatpush1.bf16.msra.mxu0 %v390
    %396 = vmatprep.subr.bf16.mxu0 0
    %397 = vmatpush1.bf16.msra.mxu0 %v391
    %398 = vmatprep.subr.bf16.mxu0 0
    %399 = vmatpush1.bf16.msra.mxu0 0
    %400 = vmatprep.subr.bf16.mxu0 0
    %401 = vmatpush1.bf16.msra.mxu0 0
    %402 = vmatprep.subr.bf16.mxu0 0
    %403 = vmatpush1.bf16.msra.mxu0 0
    %404 = vmatprep.subr.bf16.mxu0 0
    %405 = vmatpush1.bf16.msra.mxu0 0
    %406 = vmatprep.subr.bf16.mxu0 0
    %407 = vmatpush1.bf16.msra.mxu0 0
    %408 = vmatprep.subr.bf16.mxu0 0
    %409 = vmatpush1.bf16.msra.mxu0 0
    %410 = vmatprep.subr.bf16.mxu0 0
    %411 = vmatpush1.bf16.msra.mxu0 0
    %412 = vmatprep.subr.bf16.mxu0 0
    %413 = vmatpush1.bf16.msra.mxu0 0
    %414 = vmatprep.subr.bf16.mxu0 0
    %415 = vmatpush1.bf16.msra.mxu0 0
    %416 = vmatprep.subr.bf16.mxu0 0
    %417 = vmatpush1.bf16.msra.mxu0 0
    %418 = vmatprep.subr.bf16.mxu0 0
    %419 = vmatpush1.bf16.msra.mxu0 0
    %420 = vmatprep.subr.bf16.mxu0 0
    %421 = vmatpush1.bf16.msra.mxu0 0
    %422 = vmatprep.subr.bf16.mxu0 0
    %423 = vmatpush1.bf16.msra.mxu0 0
    %424 = vmatprep.subr.bf16.mxu0 0
    %425 = vmatpush1.bf16.msra.mxu0 0
    %426 = vmatprep.mubr.bf16.mxu0 0
    %427 = vmatmul.mubr.bf16.gmra.mrb[0].mxu0 %v260
    %v428 = vpop.f32.mrb[0].mxu0
    %v429 = vadd.f32 %v377, %v428
    %v430 = vpop.f32.mrb[0].mxu0
    %v431 = vpop.f32.mrb[0].mxu0
    %v432 = vpop.f32.mrb[0].mxu0
    %433 = vdwg.mxu0
    %v434 = vadd.f32 %v429, %v182
    %v435 = vtanh.pop %v434
    %v436 = vxor.u32 %v434, 2147483648
    %v437 = vmul.f32 %v436, 1.442695
    %v438 = vpow.pop %v437
    %v439 = vadd.f32 %v438, 1.0
    %v440 = vrcp.pop %v439
    %v441 = vmul.f32 1.0, %v440
    %442 = vrot.lane.b32.xlu0 %v441, 96
    %v443 = vpop.permute.xlu0 %442
    %444 = vrot.lane.b32.xlu0 %v441, 64
    %v445 = vpop.permute.xlu0 %444
    %446 = vrot.lane.b32.xlu0 %v441, 32
    %v447 = vpop.permute.xlu0 %446
    %v448 = vmul.f32 %v445, 0.0
    %v449 = vmul.f32 %v443, %v435
    %v450 = vadd.f32 %v448, %v449
    %v451 = vtanh.pop %v450
    %v452 = vmul.f32 %v447, %v451
    %v453 = vpack.c.bf16 %v329, %v329
    %v454 = vpack.c.bf16 %v452, %v452
    %v456 = vsel %vm132, %v453, 0
    %458 = vmatprep.subr.bf16.mxu0 0
    %459 = vmatpush1.bf16.msra.mxu0 %v192
    %460 = vmatprep.subr.bf16.mxu0 0
    %461 = vmatpush1.bf16.msra.mxu0 %v193
    %462 = vmatprep.subr.bf16.mxu0 0
    %463 = vmatpush1.bf16.msra.mxu0 0
    %464 = vmatprep.subr.bf16.mxu0 0
    %465 = vmatpush1.bf16.msra.mxu0 0
    %466 = vmatprep.subr.bf16.mxu0 0
    %467 = vmatpush1.bf16.msra.mxu0 0
    %468 = vmatprep.subr.bf16.mxu0 0
    %469 = vmatpush1.bf16.msra.mxu0 0
    %470 = vmatprep.subr.bf16.mxu0 0
    %471 = vmatpush1.bf16.msra.mxu0 0
    %472 = vmatprep.subr.bf16.mxu0 0
    %473 = vmatpush1.bf16.msra.mxu0 0
    %474 = vmatprep.subr.bf16.mxu0 0
    %475 = vmatpush1.bf16.msra.mxu0 0
    %476 = vmatprep.subr.bf16.mxu0 0
    %477 = vmatpush1.bf16.msra.mxu0 0
    %478 = vmatprep.subr.bf16.mxu0 0
    %479 = vmatpush1.bf16.msra.mxu0 0
    %480 = vmatprep.subr.bf16.mxu0 0
    %481 = vmatpush1.bf16.msra.mxu0 0
    %482 = vmatprep.subr.bf16.mxu0 0
    %483 = vmatpush1.bf16.msra.mxu0 0
    %484 = vmatprep.subr.bf16.mxu0 0
    %485 = vmatpush1.bf16.msra.mxu0 0
    %486 = vmatprep.subr.bf16.mxu0 0
    %487 = vmatpush1.bf16.msra.mxu0 0
    %488 = vmatprep.subr.bf16.mxu0 0
    %489 = vmatpush1.bf16.msra.mxu0 0
    %490 = vmatprep.mubr.bf16.mxu0 0
    %491 = vmatmul.mubr.bf16.gmra.mrb[0].mxu0 %v456
    %v492 = vpop.f32.mrb[0].mxu0
    %v493 = vadd.f32 0.0, %v492
    %v494 = vpop.f32.mrb[0].mxu0
    %v495 = vpop.f32.mrb[0].mxu0
    %v496 = vpop.f32.mrb[0].mxu0
    %497 = vdwg.mxu0
    %v499 = vrot.slane %v493, 4
    %v501 = vadd.f32 %v171, %v499
    %v502 = vtanh.pop %v501
    %v503 = vxor.u32 %v501, 2147483648
    %v504 = vmul.f32 %v503, 1.442695
    %v505 = vpow.pop %v504
    %v506 = vadd.f32 %v505, 1.0
    %v507 = vrcp.pop %v506
    %v508 = vmul.f32 1.0, %v507
    %v510 = vrot.slane %v508, 4
    %512 = vrot.lane.b32.xlu0 %v510, 96
    %v513 = vpop.permute.xlu0 %512
    %514 = vrot.lane.b32.xlu0 %v510, 64
    %v515 = vpop.permute.xlu0 %514
    %516 = vrot.lane.b32.xlu0 %v510, 32
    %v517 = vpop.permute.xlu0 %516
    %v518 = vmul.f32 %v515, %v327
    %v520 = vrot.slane %v502, 4
    %v522 = vmul.f32 %v513, %v520
    %v523 = vadd.f32 %v518, %v522
    %v524 = vtanh.pop %v523
    %v525 = vmul.f32 %v517, %v524
    %v527 = vsel %vm132, %v454, 0
    %529 = vmatprep.subr.bf16.mxu0 0
    %530 = vmatpush1.bf16.msra.mxu0 %v338
    %531 = vmatprep.subr.bf16.mxu0 0
    %532 = vmatpush1.bf16.msra.mxu0 %v339
    %533 = vmatprep.subr.bf16.mxu0 0
    %534 = vmatpush1.bf16.msra.mxu0 0
    %535 = vmatprep.subr.bf16.mxu0 0
    %536 = vmatpush1.bf16.msra.mxu0 0
    %537 = vmatprep.subr.bf16.mxu0 0
    %538 = vmatpush1.bf16.msra.mxu0 0
    %539 = vmatprep.subr.bf16.mxu0 0
    %540 = vmatpush1.bf16.msra.mxu0 0
    %541 = vmatprep.subr.bf16.mxu0 0
    %542 = vmatpush1.bf16.msra.mxu0 0
    %543 = vmatprep.subr.bf16.mxu0 0
    %544 = vmatpush1.bf16.msra.mxu0 0
    %545 = vmatprep.subr.bf16.mxu0 0
    %546 = vmatpush1.bf16.msra.mxu0 0
    %547 = vmatprep.subr.bf16.mxu0 0
    %548 = vmatpush1.bf16.msra.mxu0 0
    %549 = vmatprep.subr.bf16.mxu0 0
    %550 = vmatpush1.bf16.msra.mxu0 0
    %551 = vmatprep.subr.bf16.mxu0 0
    %552 = vmatpush1.bf16.msra.mxu0 0
    %553 = vmatprep.subr.bf16.mxu0 0
    %554 = vmatpush1.bf16.msra.mxu0 0
    %555 = vmatprep.subr.bf16.mxu0 0
    %556 = vmatpush1.bf16.msra.mxu0 0
    %557 = vmatprep.subr.bf16.mxu0 0
    %558 = vmatpush1.bf16.msra.mxu0 0
    %559 = vmatprep.subr.bf16.mxu0 0
    %560 = vmatpush1.bf16.msra.mxu0 0
    %561 = vmatprep.mubr.bf16.mxu0 0
    %562 = vmatmul.mubr.bf16.gmra.mrb[0].mxu0 %v527
    %v563 = vpop.f32.mrb[0].mxu0
    %v564 = vadd.f32 0.0, %v563
    %v565 = vpop.f32.mrb[0].mxu0
    %v566 = vpop.f32.mrb[0].mxu0
    %v567 = vpop.f32.mrb[0].mxu0
    %568 = vdwg.mxu0
    %569 = vmatprep.subr.bf16.mxu0 0
    %570 = vmatpush1.bf16.msra.mxu0 %v390
    %571 = vmatprep.subr.bf16.mxu0 0
    %572 = vmatpush1.bf16.msra.mxu0 %v391
    %573 = vmatprep.subr.bf16.mxu0 0
    %574 = vmatpush1.bf16.msra.mxu0 0
    %575 = vmatprep.subr.bf16.mxu0 0
    %576 = vmatpush1.bf16.msra.mxu0 0
    %577 = vmatprep.subr.bf16.mxu0 0
    %578 = vmatpush1.bf16.msra.mxu0 0
    %579 = vmatprep.subr.bf16.mxu0 0
    %580 = vmatpush1.bf16.msra.mxu0 0
    %581 = vmatprep.subr.bf16.mxu0 0
    %582 = vmatpush1.bf16.msra.mxu0 0
    %583 = vmatprep.subr.bf16.mxu0 0
    %584 = vmatpush1.bf16.msra.mxu0 0
    %585 = vmatprep.subr.bf16.mxu0 0
    %586 = vmatpush1.bf16.msra.mxu0 0
    %587 = vmatprep.subr.bf16.mxu0 0
    %588 = vmatpush1.bf16.msra.mxu0 0
    %589 = vmatprep.subr.bf16.mxu0 0
    %590 = vmatpush1.bf16.msra.mxu0 0
    %591 = vmatprep.subr.bf16.mxu0 0
    %592 = vmatpush1.bf16.msra.mxu0 0
    %593 = vmatprep.subr.bf16.mxu0 0
    %594 = vmatpush1.bf16.msra.mxu0 0
    %595 = vmatprep.subr.bf16.mxu0 0
    %596 = vmatpush1.bf16.msra.mxu0 0
    %597 = vmatprep.subr.bf16.mxu0 0
    %598 = vmatpush1.bf16.msra.mxu0 0
    %599 = vmatprep.subr.bf16.mxu0 0
    %600 = vmatpush1.bf16.msra.mxu0 0
    %601 = vmatprep.mubr.bf16.mxu0 0
    %602 = vmatmul.mubr.bf16.gmra.mrb[0].mxu0 %v456
    %v603 = vpop.f32.mrb[0].mxu0
    %v604 = vadd.f32 %v564, %v603
    %v605 = vpop.f32.mrb[0].mxu0
    %v606 = vpop.f32.mrb[0].mxu0
    %v607 = vpop.f32.mrb[0].mxu0
    %608 = vdwg.mxu0
    %v609 = vadd.f32 %v604, %v182
    %v610 = vtanh.pop %v609
    %v611 = vxor.u32 %v609, 2147483648
    %v612 = vmul.f32 %v611, 1.442695
    %v613 = vpow.pop %v612
    %v614 = vadd.f32 %v613, 1.0
    %v615 = vrcp.pop %v614
    %v616 = vmul.f32 1.0, %v615
    %617 = vrot.lane.b32.xlu0 %v616, 96
    %v618 = vpop.permute.xlu0 %617
    %619 = vrot.lane.b32.xlu0 %v616, 64
    %v620 = vpop.permute.xlu0 %619
    %621 = vrot.lane.b32.xlu0 %v616, 32
    %v622 = vpop.permute.xlu0 %621
    %v623 = vmul.f32 %v620, %v450
    %v624 = vmul.f32 %v618, %v610
    %v625 = vadd.f32 %v623, %v624
    %v626 = vtanh.pop %v625
    %v627 = vmul.f32 %v622, %v626
    %v628 = vpack.c.bf16 %v525, %v525
    %v629 = vpack.c.bf16 %v627, %v627
    %v631 = vsel %vm132, %v628, 0
    %633 = vmatprep.subr.bf16.mxu0 0
    %634 = vmatpush1.bf16.msra.mxu0 %v192
    %635 = vmatprep.subr.bf16.mxu0 0
    %636 = vmatpush1.bf16.msra.mxu0 %v193
    %637 = vmatprep.subr.bf16.mxu0 0
    %638 = vmatpush1.bf16.msra.mxu0 0
    %639 = vmatprep.subr.bf16.mxu0 0
    %640 = vmatpush1.bf16.msra.mxu0 0
    %641 = vmatprep.subr.bf16.mxu0 0
    %642 = vmatpush1.bf16.msra.mxu0 0
    %643 = vmatprep.subr.bf16.mxu0 0
    %644 = vmatpush1.bf16.msra.mxu0 0
    %645 = vmatprep.subr.bf16.mxu0 0
    %646 = vmatpush1.bf16.msra.mxu0 0
    %647 = vmatprep.subr.bf16.mxu0 0
    %648 = vmatpush1.bf16.msra.mxu0 0
    %649 = vmatprep.subr.bf16.mxu0 0
    %650 = vmatpush1.bf16.msra.mxu0 0
    %651 = vmatprep.subr.bf16.mxu0 0
    %652 = vmatpush1.bf16.msra.mxu0 0
    %653 = vmatprep.subr.bf16.mxu0 0
    %654 = vmatpush1.bf16.msra.mxu0 0
    %655 = vmatprep.subr.bf16.mxu0 0
    %656 = vmatpush1.bf16.msra.mxu0 0
    %657 = vmatprep.subr.bf16.mxu0 0
    %658 = vmatpush1.bf16.msra.mxu0 0
    %659 = vmatprep.subr.bf16.mxu0 0
    %660 = vmatpush1.bf16.msra.mxu0 0
    %661 = vmatprep.subr.bf16.mxu0 0
    %662 = vmatpush1.bf16.msra.mxu0 0
    %663 = vmatprep.subr.bf16.mxu0 0
    %664 = vmatpush1.bf16.msra.mxu0 0
    %665 = vmatprep.mubr.bf16.mxu0 0
    %666 = vmatmul.mubr.bf16.gmra.mrb[0].mxu0 %v631
    %v667 = vpop.f32.mrb[0].mxu0
    %v668 = vadd.f32 0.0, %v667
    %v669 = vpop.f32.mrb[0].mxu0
    %v670 = vpop.f32.mrb[0].mxu0
    %v671 = vpop.f32.mrb[0].mxu0
    %672 = vdwg.mxu0
    %v674 = vrot.slane %v668, 2
    %v676 = vadd.f32 %v171, %v674
    %v677 = vtanh.pop %v676
    %v678 = vxor.u32 %v676, 2147483648
    %v679 = vmul.f32 %v678, 1.442695
    %v680 = vpow.pop %v679
    %v681 = vadd.f32 %v680, 1.0
    %v682 = vrcp.pop %v681
    %v683 = vmul.f32 1.0, %v682
    %v685 = vrot.slane %v683, 6
    %687 = vrot.lane.b32.xlu0 %v685, 96
    %v688 = vpop.permute.xlu0 %687
    %689 = vrot.lane.b32.xlu0 %v685, 64
    %v690 = vpop.permute.xlu0 %689
    %691 = vrot.lane.b32.xlu0 %v685, 32
    %v692 = vpop.permute.xlu0 %691
    %v693 = vmul.f32 %v690, %v523
    %v695 = vrot.slane %v677, 6
    %v697 = vmul.f32 %v688, %v695
    %v698 = vadd.f32 %v693, %v697
    %v699 = vtanh.pop %v698
    %v700 = vmul.f32 %v692, %v699
    %v702 = vsel %vm132, %v629, 0
    %704 = vmatprep.subr.bf16.mxu0 0
    %705 = vmatpush1.bf16.msra.mxu0 %v338
    %706 = vmatprep.subr.bf16.mxu0 0
    %707 = vmatpush1.bf16.msra.mxu0 %v339
    %708 = vmatprep.subr.bf16.mxu0 0
    %709 = vmatpush1.bf16.msra.mxu0 0
    %710 = vmatprep.subr.bf16.mxu0 0
    %711 = vmatpush1.bf16.msra.mxu0 0
    %712 = vmatprep.subr.bf16.mxu0 0
    %713 = vmatpush1.bf16.msra.mxu0 0
    %714 = vmatprep.subr.bf16.mxu0 0
    %715 = vmatpush1.bf16.msra.mxu0 0
    %716 = vmatprep.subr.bf16.mxu0 0
    %717 = vmatpush1.bf16.msra.mxu0 0
    %718 = vmatprep.subr.bf16.mxu0 0
    %719 = vmatpush1.bf16.msra.mxu0 0
    %720 = vmatprep.subr.bf16.mxu0 0
    %721 = vmatpush1.bf16.msra.mxu0 0
    %722 = vmatprep.subr.bf16.mxu0 0
    %723 = vmatpush1.bf16.msra.mxu0 0
    %724 = vmatprep.subr.bf16.mxu0 0
    %725 = vmatpush1.bf16.msra.mxu0 0
    %726 = vmatprep.subr.bf16.mxu0 0
    %727 = vmatpush1.bf16.msra.mxu0 0
    %728 = vmatprep.subr.bf16.mxu0 0
    %729 = vmatpush1.bf16.msra.mxu0 0
    %730 = vmatprep.subr.bf16.mxu0 0
    %731 = vmatpush1.bf16.msra.mxu0 0
    %732 = vmatprep.subr.bf16.mxu0 0
    %733 = vmatpush1.bf16.msra.mxu0 0
    %734 = vmatprep.subr.bf16.mxu0 0
    %735 = vmatpush1.bf16.msra.mxu0 0
    %736 = vmatprep.mubr.bf16.mxu0 0
    %737 = vmatmul.mubr.bf16.gmra.mrb[0].mxu0 %v702
    %v738 = vpop.f32.mrb[0].mxu0
    %v739 = vadd.f32 0.0, %v738
    %v740 = vpop.f32.mrb[0].mxu0
    %v741 = vpop.f32.mrb[0].mxu0
    %v742 = vpop.f32.mrb[0].mxu0
    %743 = vdwg.mxu0
    %744 = vmatprep.subr.bf16.mxu0 0
    %745 = vmatpush1.bf16.msra.mxu0 %v390
    %746 = vmatprep.subr.bf16.mxu0 0
    %747 = vmatpush1.bf16.msra.mxu0 %v391
    %748 = vmatprep.subr.bf16.mxu0 0
    %749 = vmatpush1.bf16.msra.mxu0 0
    %750 = vmatprep.subr.bf16.mxu0 0
    %751 = vmatpush1.bf16.msra.mxu0 0
    %752 = vmatprep.subr.bf16.mxu0 0
    %753 = vmatpush1.bf16.msra.mxu0 0
    %754 = vmatprep.subr.bf16.mxu0 0
    %755 = vmatpush1.bf16.msra.mxu0 0
    %756 = vmatprep.subr.bf16.mxu0 0
    %757 = vmatpush1.bf16.msra.mxu0 0
    %758 = vmatprep.subr.bf16.mxu0 0
    %759 = vmatpush1.bf16.msra.mxu0 0
    %760 = vmatprep.subr.bf16.mxu0 0
    %761 = vmatpush1.bf16.msra.mxu0 0
    %762 = vmatprep.subr.bf16.mxu0 0
    %763 = vmatpush1.bf16.msra.mxu0 0
    %764 = vmatprep.subr.bf16.mxu0 0
    %765 = vmatpush1.bf16.msra.mxu0 0
    %766 = vmatprep.subr.bf16.mxu0 0
    %767 = vmatpush1.bf16.msra.mxu0 0
    %768 = vmatprep.subr.bf16.mxu0 0
    %769 = vmatpush1.bf16.msra.mxu0 0
    %770 = vmatprep.subr.bf16.mxu0 0
    %771 = vmatpush1.bf16.msra.mxu0 0
    %772 = vmatprep.subr.bf16.mxu0 0
    %773 = vmatpush1.bf16.msra.mxu0 0
    %774 = vmatprep.subr.bf16.mxu0 0
    %775 = vmatpush1.bf16.msra.mxu0 0
    %776 = vmatprep.mubr.bf16.mxu0 0
    %777 = vmatmul.mubr.bf16.gmra.mrb[0].mxu0 %v631
    %v778 = vpop.f32.mrb[0].mxu0
    %v779 = vadd.f32 %v739, %v778
    %v780 = vpop.f32.mrb[0].mxu0
    %v781 = vpop.f32.mrb[0].mxu0
    %v782 = vpop.f32.mrb[0].mxu0
    %783 = vdwg.mxu0
    %v784 = vadd.f32 %v779, %v182
    %v785 = vtanh.pop %v784
    %v786 = vxor.u32 %v784, 2147483648
    %v787 = vmul.f32 %v786, 1.442695
    %v788 = vpow.pop %v787
    %v789 = vadd.f32 %v788, 1.0
    %v790 = vrcp.pop %v789
    %v791 = vmul.f32 1.0, %v790
    %792 = vrot.lane.b32.xlu0 %v791, 96
    %v793 = vpop.permute.xlu0 %792
    %794 = vrot.lane.b32.xlu0 %v791, 64
    %v795 = vpop.permute.xlu0 %794
    %796 = vrot.lane.b32.xlu0 %v791, 32
    %v797 = vpop.permute.xlu0 %796
    %v798 = vmul.f32 %v795, %v625
    %v799 = vmul.f32 %v793, %v785
    %v800 = vadd.f32 %v798, %v799
    %v801 = vtanh.pop %v800
    %v802 = vmul.f32 %v797, %v801
    %v803 = vpack.c.bf16 %v700, %v700
    %v804 = vpack.c.bf16 %v802, %v802
    %v806 = vsel %vm132, %v803, 0
    %808 = vmatprep.subr.bf16.mxu0 0
    %809 = vmatpush1.bf16.msra.mxu0 %v192
    %810 = vmatprep.subr.bf16.mxu0 0
    %811 = vmatpush1.bf16.msra.mxu0 %v193
    %812 = vmatprep.subr.bf16.mxu0 0
    %813 = vmatpush1.bf16.msra.mxu0 0
    %814 = vmatprep.subr.bf16.mxu0 0
    %815 = vmatpush1.bf16.msra.mxu0 0
    %816 = vmatprep.subr.bf16.mxu0 0
    %817 = vmatpush1.bf16.msra.mxu0 0
    %818 = vmatprep.subr.bf16.mxu0 0
    %819 = vmatpush1.bf16.msra.mxu0 0
    %820 = vmatprep.subr.bf16.mxu0 0
    %821 = vmatpush1.bf16.msra.mxu0 0
    %822 = vmatprep.subr.bf16.mxu0 0
    %823 = vmatpush1.bf16.msra.mxu0 0
    %824 = vmatprep.subr.bf16.mxu0 0
    %825 = vmatpush1.bf16.msra.mxu0 0
    %826 = vmatprep.subr.bf16.mxu0 0
    %827 = vmatpush1.bf16.msra.mxu0 0
    %828 = vmatprep.subr.bf16.mxu0 0
    %829 = vmatpush1.bf16.msra.mxu0 0
    %830 = vmatprep.subr.bf16.mxu0 0
    %831 = vmatpush1.bf16.msra.mxu0 0
    %832 = vmatprep.subr.bf16.mxu0 0
    %833 = vmatpush1.bf16.msra.mxu0 0
    %834 = vmatprep.subr.bf16.mxu0 0
    %835 = vmatpush1.bf16.msra.mxu0 0
    %836 = vmatprep.subr.bf16.mxu0 0
    %837 = vmatpush1.bf16.msra.mxu0 0
    %838 = vmatprep.subr.bf16.mxu0 0
    %839 = vmatpush1.bf16.msra.mxu0 0
    %840 = vmatprep.mubr.bf16.mxu0 0
    %841 = vmatmul.mubr.bf16.gmra.mrb[0].mxu0 %v806
    %v842 = vpop.f32.mrb[0].mxu0
    %v843 = vadd.f32 0.0, %v842
    %v844 = vpop.f32.mrb[0].mxu0
    %v845 = vpop.f32.mrb[0].mxu0
    %v846 = vpop.f32.mrb[0].mxu0
    %847 = vdwg.mxu0
    %v848 = vadd.f32 %v174, %v843
    %v849 = vtanh.pop %v848
    %v850 = vxor.u32 %v848, 2147483648
    %v851 = vmul.f32 %v850, 1.442695
    %v852 = vpow.pop %v851
    %v853 = vadd.f32 %v852, 1.0
    %v854 = vrcp.pop %v853
    %v855 = vmul.f32 1.0, %v854
    %856 = vrot.lane.b32.xlu0 %v855, 96
    %v857 = vpop.permute.xlu0 %856
    %858 = vrot.lane.b32.xlu0 %v855, 64
    %v859 = vpop.permute.xlu0 %858
    %860 = vrot.lane.b32.xlu0 %v855, 32
    %v861 = vpop.permute.xlu0 %860
    %v862 = vmul.f32 %v859, %v698
    %v863 = vmul.f32 %v857, %v849
    %v864 = vadd.f32 %v862, %v863
    %v865 = vtanh.pop %v864
    %v866 = vmul.f32 %v861, %v865
    %v868 = vsel %vm132, %v804, 0
    %870 = vmatprep.subr.bf16.mxu0 0
    %871 = vmatpush1.bf16.msra.mxu0 %v338
    %872 = vmatprep.subr.bf16.mxu0 0
    %873 = vmatpush1.bf16.msra.mxu0 %v339
    %874 = vmatprep.subr.bf16.mxu0 0
    %875 = vmatpush1.bf16.msra.mxu0 0
    %876 = vmatprep.subr.bf16.mxu0 0
    %877 = vmatpush1.bf16.msra.mxu0 0
    %878 = vmatprep.subr.bf16.mxu0 0
    %879 = vmatpush1.bf16.msra.mxu0 0
    %880 = vmatprep.subr.bf16.mxu0 0
    %881 = vmatpush1.bf16.msra.mxu0 0
    %882 = vmatprep.subr.bf16.mxu0 0
    %883 = vmatpush1.bf16.msra.mxu0 0
    %884 = vmatprep.subr.bf16.mxu0 0
    %885 = vmatpush1.bf16.msra.mxu0 0
    %886 = vmatprep.subr.bf16.mxu0 0
    %887 = vmatpush1.bf16.msra.mxu0 0
    %888 = vmatprep.subr.bf16.mxu0 0
    %889 = vmatpush1.bf16.msra.mxu0 0
    %890 = vmatprep.subr.bf16.mxu0 0
    %891 = vmatpush1.bf16.msra.mxu0 0
    %892 = vmatprep.subr.bf16.mxu0 0
    %893 = vmatpush1.bf16.msra.mxu0 0
    %894 = vmatprep.subr.bf16.mxu0 0
    %895 = vmatpush1.bf16.msra.mxu0 0
    %896 = vmatprep.subr.bf16.mxu0 0
    %897 = vmatpush1.bf16.msra.mxu0 0
    %898 = vmatprep.subr.bf16.mxu0 0
    %899 = vmatpush1.bf16.msra.mxu0 0
    %900 = vmatprep.subr.bf16.mxu0 0
    %901 = vmatpush1.bf16.msra.mxu0 0
    %902 = vmatprep.mubr.bf16.mxu0 0
    %903 = vmatmul.mubr.bf16.gmra.mrb[0].mxu0 %v868
    %v904 = vpop.f32.mrb[0].mxu0
    %v905 = vadd.f32 0.0, %v904
    %v906 = vpop.f32.mrb[0].mxu0
    %v907 = vpop.f32.mrb[0].mxu0
    %v908 = vpop.f32.mrb[0].mxu0
    %909 = vdwg.mxu0
    %910 = vmatprep.subr.bf16.mxu0 0
    %911 = vmatpush1.bf16.msra.mxu0 %v390
    %912 = vmatprep.subr.bf16.mxu0 0
    %913 = vmatpush1.bf16.msra.mxu0 %v391
    %914 = vmatprep.subr.bf16.mxu0 0
    %915 = vmatpush1.bf16.msra.mxu0 0
    %916 = vmatprep.subr.bf16.mxu0 0
    %917 = vmatpush1.bf16.msra.mxu0 0
    %918 = vmatprep.subr.bf16.mxu0 0
    %919 = vmatpush1.bf16.msra.mxu0 0
    %920 = vmatprep.subr.bf16.mxu0 0
    %921 = vmatpush1.bf16.msra.mxu0 0
    %922 = vmatprep.subr.bf16.mxu0 0
    %923 = vmatpush1.bf16.msra.mxu0 0
    %924 = vmatprep.subr.bf16.mxu0 0
    %925 = vmatpush1.bf16.msra.mxu0 0
    %926 = vmatprep.subr.bf16.mxu0 0
    %927 = vmatpush1.bf16.msra.mxu0 0
    %928 = vmatprep.subr.bf16.mxu0 0
    %929 = vmatpush1.bf16.msra.mxu0 0
    %930 = vmatprep.subr.bf16.mxu0 0
    %931 = vmatpush1.bf16.msra.mxu0 0
    %932 = vmatprep.subr.bf16.mxu0 0
    %933 = vmatpush1.bf16.msra.mxu0 0
    %934 = vmatprep.subr.bf16.mxu0 0
    %935 = vmatpush1.bf16.msra.mxu0 0
    %936 = vmatprep.subr.bf16.mxu0 0
    %937 = vmatpush1.bf16.msra.mxu0 0
    %938 = vmatprep.subr.bf16.mxu0 0
    %939 = vmatpush1.bf16.msra.mxu0 0
    %940 = vmatprep.subr.bf16.mxu0 0
    %941 = vmatpush1.bf16.msra.mxu0 0
    %942 = vmatprep.mubr.bf16.mxu0 0
    %943 = vmatmul.mubr.bf16.gmra.mrb[0].mxu0 %v806
    %v944 = vpop.f32.mrb[0].mxu0
    %v945 = vadd.f32 %v905, %v944
    %v946 = vpop.f32.mrb[0].mxu0
    %v947 = vpop.f32.mrb[0].mxu0
    %v948 = vpop.f32.mrb[0].mxu0
    %949 = vdwg.mxu0
    %v950 = vadd.f32 %v945, %v182
    %v951 = vtanh.pop %v950
    %v952 = vxor.u32 %v950, 2147483648
    %v953 = vmul.f32 %v952, 1.442695
    %v954 = vpow.pop %v953
    %v955 = vadd.f32 %v954, 1.0
    %v956 = vrcp.pop %v955
    %v957 = vmul.f32 1.0, %v956
    %958 = vrot.lane.b32.xlu0 %v957, 96
    %v959 = vpop.permute.xlu0 %958
    %960 = vrot.lane.b32.xlu0 %v957, 64
    %v961 = vpop.permute.xlu0 %960
    %962 = vrot.lane.b32.xlu0 %v957, 32
    %v963 = vpop.permute.xlu0 %962
    %v964 = vmul.f32 %v961, %v800
    %v965 = vmul.f32 %v959, %v951
    %v966 = vadd.f32 %v964, %v965
    %v967 = vtanh.pop %v966
    %v968 = vmul.f32 %v963, %v967
    %v969 = vpack.c.bf16 %v866, %v866
    %v970 = vpack.c.bf16 %v968, %v968
    %v972 = vsel %vm132, %v969, 0
    %974 = vmatprep.subr.bf16.mxu0 0
    %975 = vmatpush1.bf16.msra.mxu0 %v192
    %976 = vmatprep.subr.bf16.mxu0 0
    %977 = vmatpush1.bf16.msra.mxu0 %v193
    %978 = vmatprep.subr.bf16.mxu0 0
    %979 = vmatpush1.bf16.msra.mxu0 0
    %980 = vmatprep.subr.bf16.mxu0 0
    %981 = vmatpush1.bf16.msra.mxu0 0
    %982 = vmatprep.subr.bf16.mxu0 0
    %983 = vmatpush1.bf16.msra.mxu0 0
    %984 = vmatprep.subr.bf16.mxu0 0
    %985 = vmatpush1.bf16.msra.mxu0 0
    %986 = vmatprep.subr.bf16.mxu0 0
    %987 = vmatpush1.bf16.msra.mxu0 0
    %988 = vmatprep.subr.bf16.mxu0 0
    %989 = vmatpush1.bf16.msra.mxu0 0
    %990 = vmatprep.subr.bf16.mxu0 0
    %991 = vmatpush1.bf16.msra.mxu0 0
    %992 = vmatprep.subr.bf16.mxu0 0
    %993 = vmatpush1.bf16.msra.mxu0 0
    %994 = vmatprep.subr.bf16.mxu0 0
    %995 = vmatpush1.bf16.msra.mxu0 0
    %996 = vmatprep.subr.bf16.mxu0 0
    %997 = vmatpush1.bf16.msra.mxu0 0
    %998 = vmatprep.subr.bf16.mxu0 0
    %999 = vmatpush1.bf16.msra.mxu0 0
    %1000 = vmatprep.subr.bf16.mxu0 0
    %1001 = vmatpush1.bf16.msra.mxu0 0
    %1002 = vmatprep.subr.bf16.mxu0 0
    %1003 = vmatpush1.bf16.msra.mxu0 0
    %1004 = vmatprep.subr.bf16.mxu0 0
    %1005 = vmatpush1.bf16.msra.mxu0 0
    %1006 = vmatprep.mubr.bf16.mxu0 0
    %1007 = vmatmul.mubr.bf16.gmra.mrb[0].mxu0 %v972
    %v1008 = vpop.f32.mrb[0].mxu0
    %v1009 = vadd.f32 0.0, %v1008
    %v1010 = vpop.f32.mrb[0].mxu0
    %v1011 = vpop.f32.mrb[0].mxu0
    %v1012 = vpop.f32.mrb[0].mxu0
    %1013 = vdwg.mxu0
    %v1015 = vrot.slane %v1009, 6
    %v1017 = vadd.f32 %v174, %v1015
    %v1018 = vtanh.pop %v1017
    %v1019 = vxor.u32 %v1017, 2147483648
    %v1020 = vmul.f32 %v1019, 1.442695
    %v1021 = vpow.pop %v1020
    %v1022 = vadd.f32 %v1021, 1.0
    %v1023 = vrcp.pop %v1022
    %v1024 = vmul.f32 1.0, %v1023
    %v1026 = vrot.slane %v1024, 2
    %1028 = vrot.lane.b32.xlu0 %v1026, 96
    %v1029 = vpop.permute.xlu0 %1028
    %1030 = vrot.lane.b32.xlu0 %v1026, 64
    %v1031 = vpop.permute.xlu0 %1030
    %1032 = vrot.lane.b32.xlu0 %v1026, 32
    %v1033 = vpop.permute.xlu0 %1032
    %v1034 = vmul.f32 %v1031, %v864
    %v1036 = vrot.slane %v1018, 2
    %v1038 = vmul.f32 %v1029, %v1036
    %v1039 = vadd.f32 %v1034, %v1038
    %v1040 = vtanh.pop %v1039
    %v1041 = vmul.f32 %v1033, %v1040
    %v1043 = vsel %vm132, %v970, 0
    %1045 = vmatprep.subr.bf16.mxu0 0
    %1046 = vmatpush1.bf16.msra.mxu0 %v338
    %1047 = vmatprep.subr.bf16.mxu0 0
    %1048 = vmatpush1.bf16.msra.mxu0 %v339
    %1049 = vmatprep.subr.bf16.mxu0 0
    %1050 = vmatpush1.bf16.msra.mxu0 0
    %1051 = vmatprep.subr.bf16.mxu0 0
    %1052 = vmatpush1.bf16.msra.mxu0 0
    %1053 = vmatprep.subr.bf16.mxu0 0
    %1054 = vmatpush1.bf16.msra.mxu0 0
    %1055 = vmatprep.subr.bf16.mxu0 0
    %1056 = vmatpush1.bf16.msra.mxu0 0
    %1057 = vmatprep.subr.bf16.mxu0 0
    %1058 = vmatpush1.bf16.msra.mxu0 0
    %1059 = vmatprep.subr.bf16.mxu0 0
    %1060 = vmatpush1.bf16.msra.mxu0 0
    %1061 = vmatprep.subr.bf16.mxu0 0
    %1062 = vmatpush1.bf16.msra.mxu0 0
    %1063 = vmatprep.subr.bf16.mxu0 0
    %1064 = vmatpush1.bf16.msra.mxu0 0
    %1065 = vmatprep.subr.bf16.mxu0 0
    %1066 = vmatpush1.bf16.msra.mxu0 0
    %1067 = vmatprep.subr.bf16.mxu0 0
    %1068 = vmatpush1.bf16.msra.mxu0 0
    %1069 = vmatprep.subr.bf16.mxu0 0
    %1070 = vmatpush1.bf16.msra.mxu0 0
    %1071 = vmatprep.subr.bf16.mxu0 0
    %1072 = vmatpush1.bf16.msra.mxu0 0
    %1073 = vmatprep.subr.bf16.mxu0 0
    %1074 = vmatpush1.bf16.msra.mxu0 0
    %1075 = vmatprep.subr.bf16.mxu0 0
    %1076 = vmatpush1.bf16.msra.mxu0 0
    %1077 = vmatprep.mubr.bf16.mxu0 0
    %1078 = vmatmul.mubr.bf16.gmra.mrb[0].mxu0 %v1043
    %v1079 = vpop.f32.mrb[0].mxu0
    %v1080 = vadd.f32 0.0, %v1079
    %v1081 = vpop.f32.mrb[0].mxu0
    %v1082 = vpop.f32.mrb[0].mxu0
    %v1083 = vpop.f32.mrb[0].mxu0
    %1084 = vdwg.mxu0
    %1085 = vmatprep.subr.bf16.mxu0 0
    %1086 = vmatpush1.bf16.msra.mxu0 %v390
    %1087 = vmatprep.subr.bf16.mxu0 0
    %1088 = vmatpush1.bf16.msra.mxu0 %v391
    %1089 = vmatprep.subr.bf16.mxu0 0
    %1090 = vmatpush1.bf16.msra.mxu0 0
    %1091 = vmatprep.subr.bf16.mxu0 0
    %1092 = vmatpush1.bf16.msra.mxu0 0
    %1093 = vmatprep.subr.bf16.mxu0 0
    %1094 = vmatpush1.bf16.msra.mxu0 0
    %1095 = vmatprep.subr.bf16.mxu0 0
    %1096 = vmatpush1.bf16.msra.mxu0 0
    %1097 = vmatprep.subr.bf16.mxu0 0
    %1098 = vmatpush1.bf16.msra.mxu0 0
    %1099 = vmatprep.subr.bf16.mxu0 0
    %1100 = vmatpush1.bf16.msra.mxu0 0
    %1101 = vmatprep.subr.bf16.mxu0 0
    %1102 = vmatpush1.bf16.msra.mxu0 0
    %1103 = vmatprep.subr.bf16.mxu0 0
    %1104 = vmatpush1.bf16.msra.mxu0 0
    %1105 = vmatprep.subr.bf16.mxu0 0
    %1106 = vmatpush1.bf16.msra.mxu0 0
    %1107 = vmatprep.subr.bf16.mxu0 0
    %1108 = vmatpush1.bf16.msra.mxu0 0
    %1109 = vmatprep.subr.bf16.mxu0 0
    %1110 = vmatpush1.bf16.msra.mxu0 0
    %1111 = vmatprep.subr.bf16.mxu0 0
    %1112 = vmatpush1.bf16.msra.mxu0 0
    %1113 = vmatprep.subr.bf16.mxu0 0
    %1114 = vmatpush1.bf16.msra.mxu0 0
    %1115 = vmatprep.subr.bf16.mxu0 0
    %1116 = vmatpush1.bf16.msra.mxu0 0
    %1117 = vmatprep.mubr.bf16.mxu0 0
    %1118 = vmatmul.mubr.bf16.gmra.mrb[0].mxu0 %v972
    %v1119 = vpop.f32.mrb[0].mxu0
    %v1120 = vadd.f32 %v1080, %v1119
    %v1121 = vpop.f32.mrb[0].mxu0
    %v1122 = vpop.f32.mrb[0].mxu0
    %v1123 = vpop.f32.mrb[0].mxu0
    %1124 = vdwg.mxu0
    %v1125 = vadd.f32 %v1120, %v182
    %v1126 = vtanh.pop %v1125
    %v1127 = vxor.u32 %v1125, 2147483648
    %v1128 = vmul.f32 %v1127, 1.442695
    %v1129 = vpow.pop %v1128
    %v1130 = vadd.f32 %v1129, 1.0
    %v1131 = vrcp.pop %v1130
    %v1132 = vmul.f32 1.0, %v1131
    %1133 = vrot.lane.b32.xlu0 %v1132, 96
    %v1134 = vpop.permute.xlu0 %1133
    %1135 = vrot.lane.b32.xlu0 %v1132, 64
    %v1136 = vpop.permute.xlu0 %1135
    %1137 = vrot.lane.b32.xlu0 %v1132, 32
    %v1138 = vpop.permute.xlu0 %1137
    %v1139 = vmul.f32 %v1136, %v966
    %v1140 = vmul.f32 %v1134, %v1126
    %v1141 = vadd.f32 %v1139, %v1140
    %v1142 = vtanh.pop %v1141
    %v1143 = vmul.f32 %v1138, %v1142
    %v1144 = vpack.c.bf16 %v1041, %v1041
    %v1145 = vpack.c.bf16 %v1143, %v1143
    %v1147 = vsel %vm132, %v1144, 0
    %1149 = vmatprep.subr.bf16.mxu0 0
    %1150 = vmatpush1.bf16.msra.mxu0 %v192
    %1151 = vmatprep.subr.bf16.mxu0 0
    %1152 = vmatpush1.bf16.msra.mxu0 %v193
    %1153 = vmatprep.subr.bf16.mxu0 0
    %1154 = vmatpush1.bf16.msra.mxu0 0
    %1155 = vmatprep.subr.bf16.mxu0 0
    %1156 = vmatpush1.bf16.msra.mxu0 0
    %1157 = vmatprep.subr.bf16.mxu0 0
    %1158 = vmatpush1.bf16.msra.mxu0 0
    %1159 = vmatprep.subr.bf16.mxu0 0
    %1160 = vmatpush1.bf16.msra.mxu0 0
    %1161 = vmatprep.subr.bf16.mxu0 0
    %1162 = vmatpush1.bf16.msra.mxu0 0
    %1163 = vmatprep.subr.bf16.mxu0 0
    %1164 = vmatpush1.bf16.msra.mxu0 0
    %1165 = vmatprep.subr.bf16.mxu0 0
    %1166 = vmatpush1.bf16.msra.mxu0 0
    %1167 = vmatprep.subr.bf16.mxu0 0
    %1168 = vmatpush1.bf16.msra.mxu0 0
    %1169 = vmatprep.subr.bf16.mxu0 0
    %1170 = vmatpush1.bf16.msra.mxu0 0
    %1171 = vmatprep.subr.bf16.mxu0 0
    %1172 = vmatpush1.bf16.msra.mxu0 0
    %1173 = vmatprep.subr.bf16.mxu0 0
    %1174 = vmatpush1.bf16.msra.mxu0 0
    %1175 = vmatprep.subr.bf16.mxu0 0
    %1176 = vmatpush1.bf16.msra.mxu0 0
    %1177 = vmatprep.subr.bf16.mxu0 0
    %1178 = vmatpush1.bf16.msra.mxu0 0
    %1179 = vmatprep.subr.bf16.mxu0 0
    %1180 = vmatpush1.bf16.msra.mxu0 0
    %1181 = vmatprep.mubr.bf16.mxu0 0
    %1182 = vmatmul.mubr.bf16.gmra.mrb[0].mxu0 %v1147
    %v1183 = vpop.f32.mrb[0].mxu0
    %v1184 = vadd.f32 0.0, %v1183
    %v1185 = vpop.f32.mrb[0].mxu0
    %v1186 = vpop.f32.mrb[0].mxu0
    %v1187 = vpop.f32.mrb[0].mxu0
    %1188 = vdwg.mxu0
    %v1190 = vrot.slane %v1184, 4
    %v1192 = vadd.f32 %v174, %v1190
    %v1193 = vtanh.pop %v1192
    %v1194 = vxor.u32 %v1192, 2147483648
    %v1195 = vmul.f32 %v1194, 1.442695
    %v1196 = vpow.pop %v1195
    %v1197 = vadd.f32 %v1196, 1.0
    %v1198 = vrcp.pop %v1197
    %v1199 = vmul.f32 1.0, %v1198
    %v1201 = vrot.slane %v1199, 4
    %1203 = vrot.lane.b32.xlu0 %v1201, 96
    %v1204 = vpop.permute.xlu0 %1203
    %1205 = vrot.lane.b32.xlu0 %v1201, 64
    %v1206 = vpop.permute.xlu0 %1205
    %1207 = vrot.lane.b32.xlu0 %v1201, 32
    %v1208 = vpop.permute.xlu0 %1207
    %v1209 = vmul.f32 %v1206, %v1039
    %v1211 = vrot.slane %v1193, 4
    %v1213 = vmul.f32 %v1204, %v1211
    %v1214 = vadd.f32 %v1209, %v1213
    %v1215 = vtanh.pop %v1214
    %v1216 = vmul.f32 %v1208, %v1215
    %v1218 = vsel %vm132, %v1145, 0
    %1220 = vmatprep.subr.bf16.mxu0 0
    %1221 = vmatpush1.bf16.msra.mxu0 %v338
    %1222 = vmatprep.subr.bf16.mxu0 0
    %1223 = vmatpush1.bf16.msra.mxu0 %v339
    %1224 = vmatprep.subr.bf16.mxu0 0
    %1225 = vmatpush1.bf16.msra.mxu0 0
    %1226 = vmatprep.subr.bf16.mxu0 0
    %1227 = vmatpush1.bf16.msra.mxu0 0
    %1228 = vmatprep.subr.bf16.mxu0 0
    %1229 = vmatpush1.bf16.msra.mxu0 0
    %1230 = vmatprep.subr.bf16.mxu0 0
    %1231 = vmatpush1.bf16.msra.mxu0 0
    %1232 = vmatprep.subr.bf16.mxu0 0
    %1233 = vmatpush1.bf16.msra.mxu0 0
    %1234 = vmatprep.subr.bf16.mxu0 0
    %1235 = vmatpush1.bf16.msra.mxu0 0
    %1236 = vmatprep.subr.bf16.mxu0 0
    %1237 = vmatpush1.bf16.msra.mxu0 0
    %1238 = vmatprep.subr.bf16.mxu0 0
    %1239 = vmatpush1.bf16.msra.mxu0 0
    %1240 = vmatprep.subr.bf16.mxu0 0
    %1241 = vmatpush1.bf16.msra.mxu0 0
    %1242 = vmatprep.subr.bf16.mxu0 0
    %1243 = vmatpush1.bf16.msra.mxu0 0
    %1244 = vmatprep.subr.bf16.mxu0 0
    %1245 = vmatpush1.bf16.msra.mxu0 0
    %1246 = vmatprep.subr.bf16.mxu0 0
    %1247 = vmatpush1.bf16.msra.mxu0 0
    %1248 = vmatprep.subr.bf16.mxu0 0
    %1249 = vmatpush1.bf16.msra.mxu0 0
    %1250 = vmatprep.subr.bf16.mxu0 0
    %1251 = vmatpush1.bf16.msra.mxu0 0
    %1252 = vmatprep.mubr.bf16.mxu0 0
    %1253 = vmatmul.mubr.bf16.gmra.mrb[0].mxu0 %v1218
    %v1254 = vpop.f32.mrb[0].mxu0
    %v1255 = vadd.f32 0.0, %v1254
    %v1256 = vpop.f32.mrb[0].mxu0
    %v1257 = vpop.f32.mrb[0].mxu0
    %v1258 = vpop.f32.mrb[0].mxu0
    %1259 = vdwg.mxu0
    %1260 = vmatprep.subr.bf16.mxu0 0
    %1261 = vmatpush1.bf16.msra.mxu0 %v390
    %1262 = vmatprep.subr.bf16.mxu0 0
    %1263 = vmatpush1.bf16.msra.mxu0 %v391
    %1264 = vmatprep.subr.bf16.mxu0 0
    %1265 = vmatpush1.bf16.msra.mxu0 0
    %1266 = vmatprep.subr.bf16.mxu0 0
    %1267 = vmatpush1.bf16.msra.mxu0 0
    %1268 = vmatprep.subr.bf16.mxu0 0
    %1269 = vmatpush1.bf16.msra.mxu0 0
    %1270 = vmatprep.subr.bf16.mxu0 0
    %1271 = vmatpush1.bf16.msra.mxu0 0
    %1272 = vmatprep.subr.bf16.mxu0 0
    %1273 = vmatpush1.bf16.msra.mxu0 0
    %1274 = vmatprep.subr.bf16.mxu0 0
    %1275 = vmatpush1.bf16.msra.mxu0 0
    %1276 = vmatprep.subr.bf16.mxu0 0
    %1277 = vmatpush1.bf16.msra.mxu0 0
    %1278 = vmatprep.subr.bf16.mxu0 0
    %1279 = vmatpush1.bf16.msra.mxu0 0
    %1280 = vmatprep.subr.bf16.mxu0 0
    %1281 = vmatpush1.bf16.msra.mxu0 0
    %1282 = vmatprep.subr.bf16.mxu0 0
    %1283 = vmatpush1.bf16.msra.mxu0 0
    %1284 = vmatprep.subr.bf16.mxu0 0
    %1285 = vmatpush1.bf16.msra.mxu0 0
    %1286 = vmatprep.subr.bf16.mxu0 0
    %1287 = vmatpush1.bf16.msra.mxu0 0
    %1288 = vmatprep.subr.bf16.mxu0 0
    %1289 = vmatpush1.bf16.msra.mxu0 0
    %1290 = vmatprep.subr.bf16.mxu0 0
    %1291 = vmatpush1.bf16.msra.mxu0 0
    %1292 = vmatprep.mubr.bf16.mxu0 0
    %1293 = vmatmul.mubr.bf16.gmra.mrb[0].mxu0 %v1147
    %v1294 = vpop.f32.mrb[0].mxu0
    %v1295 = vadd.f32 %v1255, %v1294
    %v1296 = vpop.f32.mrb[0].mxu0
    %v1297 = vpop.f32.mrb[0].mxu0
    %v1298 = vpop.f32.mrb[0].mxu0
    %1299 = vdwg.mxu0
    %v1300 = vadd.f32 %v1295, %v182
    %v1301 = vtanh.pop %v1300
    %v1302 = vxor.u32 %v1300, 2147483648
    %v1303 = vmul.f32 %v1302, 1.442695
    %v1304 = vpow.pop %v1303
    %v1305 = vadd.f32 %v1304, 1.0
    %v1306 = vrcp.pop %v1305
    %v1307 = vmul.f32 1.0, %v1306
    %1308 = vrot.lane.b32.xlu0 %v1307, 96
    %v1309 = vpop.permute.xlu0 %1308
    %1310 = vrot.lane.b32.xlu0 %v1307, 64
    %v1311 = vpop.permute.xlu0 %1310
    %1312 = vrot.lane.b32.xlu0 %v1307, 32
    %v1313 = vpop.permute.xlu0 %1312
    %v1314 = vmul.f32 %v1311, %v1141
    %v1315 = vmul.f32 %v1309, %v1301
    %v1316 = vadd.f32 %v1314, %v1315
    %v1317 = vtanh.pop %v1316
    %v1318 = vmul.f32 %v1313, %v1317
    %v1319 = vpack.c.bf16 %v1216, %v1216
    %v1320 = vpack.c.bf16 %v1318, %v1318
    %v1322 = vsel %vm132, %v1319, 0
    %1324 = vmatprep.subr.bf16.mxu0 0
    %1325 = vmatpush1.bf16.msra.mxu0 %v192
    %1326 = vmatprep.subr.bf16.mxu0 0
    %1327 = vmatpush1.bf16.msra.mxu0 %v193
    %1328 = vmatprep.subr.bf16.mxu0 0
    %1329 = vmatpush1.bf16.msra.mxu0 0
    %1330 = vmatprep.subr.bf16.mxu0 0
    %1331 = vmatpush1.bf16.msra.mxu0 0
    %1332 = vmatprep.subr.bf16.mxu0 0
    %1333 = vmatpush1.bf16.msra.mxu0 0
    %1334 = vmatprep.subr.bf16.mxu0 0
    %1335 = vmatpush1.bf16.msra.mxu0 0
    %1336 = vmatprep.subr.bf16.mxu0 0
    %1337 = vmatpush1.bf16.msra.mxu0 0
    %1338 = vmatprep.subr.bf16.mxu0 0
    %1339 = vmatpush1.bf16.msra.mxu0 0
    %1340 = vmatprep.subr.bf16.mxu0 0
    %1341 = vmatpush1.bf16.msra.mxu0 0
    %1342 = vmatprep.subr.bf16.mxu0 0
    %1343 = vmatpush1.bf16.msra.mxu0 0
    %1344 = vmatprep.subr.bf16.mxu0 0
    %1345 = vmatpush1.bf16.msra.mxu0 0
    %1346 = vmatprep.subr.bf16.mxu0 0
    %1347 = vmatpush1.bf16.msra.mxu0 0
    %1348 = vmatprep.subr.bf16.mxu0 0
    %1349 = vmatpush1.bf16.msra.mxu0 0
    %1350 = vmatprep.subr.bf16.mxu0 0
    %1351 = vmatpush1.bf16.msra.mxu0 0
    %1352 = vmatprep.subr.bf16.mxu0 0
    %1353 = vmatpush1.bf16.msra.mxu0 0
    %1354 = vmatprep.subr.bf16.mxu0 0
    %1355 = vmatpush1.bf16.msra.mxu0 0
    %1356 = vmatprep.mubr.bf16.mxu0 0
    %1357 = vmatmul.mubr.bf16.gmra.mrb[0].mxu0 %v1322
    %v1358 = vpop.f32.mrb[0].mxu0
    %v1359 = vadd.f32 0.0, %v1358
    %v1360 = vpop.f32.mrb[0].mxu0
    %v1361 = vpop.f32.mrb[0].mxu0
    %v1362 = vpop.f32.mrb[0].mxu0
    %1363 = vdwg.mxu0
    %v1365 = vrot.slane %v1359, 2
    %v1367 = vadd.f32 %v174, %v1365
    %v1368 = vtanh.pop %v1367
    %v1369 = vxor.u32 %v1367, 2147483648
    %v1370 = vmul.f32 %v1369, 1.442695
    %v1371 = vpow.pop %v1370
    %v1372 = vadd.f32 %v1371, 1.0
    %v1373 = vrcp.pop %v1372
    %v1374 = vmul.f32 1.0, %v1373
    %v1376 = vrot.slane %v1374, 6
    %1378 = vrot.lane.b32.xlu0 %v1376, 96
    %v1379 = vpop.permute.xlu0 %1378
    %1380 = vrot.lane.b32.xlu0 %v1376, 64
    %v1381 = vpop.permute.xlu0 %1380
    %1382 = vrot.lane.b32.xlu0 %v1376, 32
    %v1383 = vpop.permute.xlu0 %1382
    %v1384 = vmul.f32 %v1381, %v1214
    %v1386 = vrot.slane %v1368, 6
    %v1388 = vmul.f32 %v1379, %v1386
    %v1389 = vadd.f32 %v1384, %v1388
    %v1390 = vtanh.pop %v1389
    %v1391 = vmul.f32 %v1383, %v1390
    %v1393 = vsel %vm132, %v1320, 0
    %1395 = vmatprep.subr.bf16.mxu0 0
    %1396 = vmatpush1.bf16.msra.mxu0 %v338
    %1397 = vmatprep.subr.bf16.mxu0 0
    %1398 = vmatpush1.bf16.msra.mxu0 %v339
    %1399 = vmatprep.subr.bf16.mxu0 0
    %1400 = vmatpush1.bf16.msra.mxu0 0
    %1401 = vmatprep.subr.bf16.mxu0 0
    %1402 = vmatpush1.bf16.msra.mxu0 0
    %1403 = vmatprep.subr.bf16.mxu0 0
    %1404 = vmatpush1.bf16.msra.mxu0 0
    %1405 = vmatprep.subr.bf16.mxu0 0
    %1406 = vmatpush1.bf16.msra.mxu0 0
    %1407 = vmatprep.subr.bf16.mxu0 0
    %1408 = vmatpush1.bf16.msra.mxu0 0
    %1409 = vmatprep.subr.bf16.mxu0 0
    %1410 = vmatpush1.bf16.msra.mxu0 0
    %1411 = vmatprep.subr.bf16.mxu0 0
    %1412 = vmatpush1.bf16.msra.mxu0 0
    %1413 = vmatprep.subr.bf16.mxu0 0
    %1414 = vmatpush1.bf16.msra.mxu0 0
    %1415 = vmatprep.subr.bf16.mxu0 0
    %1416 = vmatpush1.bf16.msra.mxu0 0
    %1417 = vmatprep.subr.bf16.mxu0 0
    %1418 = vmatpush1.bf16.msra.mxu0 0
    %1419 = vmatprep.subr.bf16.mxu0 0
    %1420 = vmatpush1.bf16.msra.mxu0 0
    %1421 = vmatprep.subr.bf16.mxu0 0
    %1422 = vmatpush1.bf16.msra.mxu0 0
    %1423 = vmatprep.subr.bf16.mxu0 0
    %1424 = vmatpush1.bf16.msra.mxu0 0
    %1425 = vmatprep.subr.bf16.mxu0 0
    %1426 = vmatpush1.bf16.msra.mxu0 0
    %1427 = vmatprep.mubr.bf16.mxu0 0
    %1428 = vmatmul.mubr.bf16.gmra.mrb[0].mxu0 %v1393
    %v1429 = vpop.f32.mrb[0].mxu0
    %v1430 = vadd.f32 0.0, %v1429
    %v1431 = vpop.f32.mrb[0].mxu0
    %v1432 = vpop.f32.mrb[0].mxu0
    %v1433 = vpop.f32.mrb[0].mxu0
    %1434 = vdwg.mxu0
    %1435 = vmatprep.subr.bf16.mxu0 0
    %1436 = vmatpush1.bf16.msra.mxu0 %v390
    %1437 = vmatprep.subr.bf16.mxu0 0
    %1438 = vmatpush1.bf16.msra.mxu0 %v391
    %1439 = vmatprep.subr.bf16.mxu0 0
    %1440 = vmatpush1.bf16.msra.mxu0 0
    %1441 = vmatprep.subr.bf16.mxu0 0
    %1442 = vmatpush1.bf16.msra.mxu0 0
    %1443 = vmatprep.subr.bf16.mxu0 0
    %1444 = vmatpush1.bf16.msra.mxu0 0
    %1445 = vmatprep.subr.bf16.mxu0 0
    %1446 = vmatpush1.bf16.msra.mxu0 0
    %1447 = vmatprep.subr.bf16.mxu0 0
    %1448 = vmatpush1.bf16.msra.mxu0 0
    %1449 = vmatprep.subr.bf16.mxu0 0
    %1450 = vmatpush1.bf16.msra.mxu0 0
    %1451 = vmatprep.subr.bf16.mxu0 0
    %1452 = vmatpush1.bf16.msra.mxu0 0
    %1453 = vmatprep.subr.bf16.mxu0 0
    %1454 = vmatpush1.bf16.msra.mxu0 0
    %1455 = vmatprep.subr.bf16.mxu0 0
    %1456 = vmatpush1.bf16.msra.mxu0 0
    %1457 = vmatprep.subr.bf16.mxu0 0
    %1458 = vmatpush1.bf16.msra.mxu0 0
    %1459 = vmatprep.subr.bf16.mxu0 0
    %1460 = vmatpush1.bf16.msra.mxu0 0
    %1461 = vmatprep.subr.bf16.mxu0 0
    %1462 = vmatpush1.bf16.msra.mxu0 0
    %1463 = vmatprep.subr.bf16.mxu0 0
    %1464 = vmatpush1.bf16.msra.mxu0 0
    %1465 = vmatprep.subr.bf16.mxu0 0
    %1466 = vmatpush1.bf16.msra.mxu0 0
    %1467 = vmatprep.mubr.bf16.mxu0 0
    %1468 = vmatmul.mubr.bf16.gmra.mrb[0].mxu0 %v1322
    %v1469 = vpop.f32.mrb[0].mxu0
    %v1470 = vadd.f32 %v1430, %v1469
    %v1471 = vpop.f32.mrb[0].mxu0
    %v1472 = vpop.f32.mrb[0].mxu0
    %v1473 = vpop.f32.mrb[0].mxu0
    %1474 = vdwg.mxu0
    %v1475 = vadd.f32 %v1470, %v182
    %v1476 = vtanh.pop %v1475
    %v1477 = vxor.u32 %v1475, 2147483648
    %v1478 = vmul.f32 %v1477, 1.442695
    %v1479 = vpow.pop %v1478
    %v1480 = vadd.f32 %v1479, 1.0
    %v1481 = vrcp.pop %v1480
    %v1482 = vmul.f32 1.0, %v1481
    %1483 = vrot.lane.b32.xlu0 %v1482, 96
    %v1484 = vpop.permute.xlu0 %1483
    %1485 = vrot.lane.b32.xlu0 %v1482, 64
    %v1486 = vpop.permute.xlu0 %1485
    %1487 = vrot.lane.b32.xlu0 %v1482, 32
    %v1488 = vpop.permute.xlu0 %1487
    %v1489 = vmul.f32 %v1486, %v1316
    %v1490 = vmul.f32 %v1484, %v1476
    %v1491 = vadd.f32 %v1489, %v1490
    %v1492 = vtanh.pop %v1491
    %v1493 = vmul.f32 %v1488, %v1492
    %v1494 = vpack.c.bf16 %v1391, %v1391
    %v1495 = vpack.c.bf16 %v1493, %v1493
    %v1497 = vsel %vm132, %v1495, 0
    %1499 = vmatprep.subr.bf16.mxu0 0
    %1500 = vmatpush1.bf16.msra.mxu0 %v338
    %1501 = vmatprep.subr.bf16.mxu0 0
    %1502 = vmatpush1.bf16.msra.mxu0 %v339
    %1503 = vmatprep.subr.bf16.mxu0 0
    %1504 = vmatpush1.bf16.msra.mxu0 0
    %1505 = vmatprep.subr.bf16.mxu0 0
    %1506 = vmatpush1.bf16.msra.mxu0 0
    %1507 = vmatprep.subr.bf16.mxu0 0
    %1508 = vmatpush1.bf16.msra.mxu0 0
    %1509 = vmatprep.subr.bf16.mxu0 0
    %1510 = vmatpush1.bf16.msra.mxu0 0
    %1511 = vmatprep.subr.bf16.mxu0 0
    %1512 = vmatpush1.bf16.msra.mxu0 0
    %1513 = vmatprep.subr.bf16.mxu0 0
    %1514 = vmatpush1.bf16.msra.mxu0 0
    %1515 = vmatprep.subr.bf16.mxu0 0
    %1516 = vmatpush1.bf16.msra.mxu0 0
    %1517 = vmatprep.subr.bf16.mxu0 0
    %1518 = vmatpush1.bf16.msra.mxu0 0
    %1519 = vmatprep.subr.bf16.mxu0 0
    %1520 = vmatpush1.bf16.msra.mxu0 0
    %1521 = vmatprep.subr.bf16.mxu0 0
    %1522 = vmatpush1.bf16.msra.mxu0 0
    %1523 = vmatprep.subr.bf16.mxu0 0
    %1524 = vmatpush1.bf16.msra.mxu0 0
    %1525 = vmatprep.subr.bf16.mxu0 0
    %1526 = vmatpush1.bf16.msra.mxu0 0
    %1527 = vmatprep.subr.bf16.mxu0 0
    %1528 = vmatpush1.bf16.msra.mxu0 0
    %1529 = vmatprep.subr.bf16.mxu0 0
    %1530 = vmatpush1.bf16.msra.mxu0 0
    %1531 = vmatprep.mubr.bf16.mxu0 0
    %1532 = vmatmul.mubr.bf16.gmra.mrb[0].mxu0 %v1497
    %v1533 = vpop.f32.mrb[0].mxu0
    %v1534 = vadd.f32 0.0, %v1533
    %v1535 = vpop.f32.mrb[0].mxu0
    %v1536 = vpop.f32.mrb[0].mxu0
    %v1537 = vpop.f32.mrb[0].mxu0
    %1538 = vdwg.mxu0
    %v1540 = vsel %vm132, %v1494, 0
    %1542 = vmatprep.subr.bf16.mxu0 0
    %1543 = vmatpush1.bf16.msra.mxu0 %v390
    %1544 = vmatprep.subr.bf16.mxu0 0
    %1545 = vmatpush1.bf16.msra.mxu0 %v391
    %1546 = vmatprep.subr.bf16.mxu0 0
    %1547 = vmatpush1.bf16.msra.mxu0 0
    %1548 = vmatprep.subr.bf16.mxu0 0
    %1549 = vmatpush1.bf16.msra.mxu0 0
    %1550 = vmatprep.subr.bf16.mxu0 0
    %1551 = vmatpush1.bf16.msra.mxu0 0
    %1552 = vmatprep.subr.bf16.mxu0 0
    %1553 = vmatpush1.bf16.msra.mxu0 0
    %1554 = vmatprep.subr.bf16.mxu0 0
    %1555 = vmatpush1.bf16.msra.mxu0 0
    %1556 = vmatprep.subr.bf16.mxu0 0
    %1557 = vmatpush1.bf16.msra.mxu0 0
    %1558 = vmatprep.subr.bf16.mxu0 0
    %1559 = vmatpush1.bf16.msra.mxu0 0
    %1560 = vmatprep.subr.bf16.mxu0 0
    %1561 = vmatpush1.bf16.msra.mxu0 0
    %1562 = vmatprep.subr.bf16.mxu0 0
    %1563 = vmatpush1.bf16.msra.mxu0 0
    %1564 = vmatprep.subr.bf16.mxu0 0
    %1565 = vmatpush1.bf16.msra.mxu0 0
    %1566 = vmatprep.subr.bf16.mxu0 0
    %1567 = vmatpush1.bf16.msra.mxu0 0
    %1568 = vmatprep.subr.bf16.mxu0 0
    %1569 = vmatpush1.bf16.msra.mxu0 0
    %1570 = vmatprep.subr.bf16.mxu0 0
    %1571 = vmatpush1.bf16.msra.mxu0 0
    %1572 = vmatprep.subr.bf16.mxu0 0
    %1573 = vmatpush1.bf16.msra.mxu0 0
    %1574 = vmatprep.mubr.bf16.mxu0 0
    %1575 = vmatmul.mubr.bf16.gmra.mrb[0].mxu0 %v1540
    %v1576 = vpop.f32.mrb[0].mxu0
    %v1577 = vadd.f32 %v1534, %v1576
    %v1578 = vpop.f32.mrb[0].mxu0
    %v1579 = vpop.f32.mrb[0].mxu0
    %v1580 = vpop.f32.mrb[0].mxu0
    %1581 = vdwg.mxu0
    %v1582 = vadd.f32 %v1577, %v182
    %v1583 = vtanh.pop %v1582
    %v1584 = vxor.u32 %v1582, 2147483648
    %v1585 = vmul.f32 %v1584, 1.442695
    %v1586 = vpow.pop %v1585
    %v1587 = vadd.f32 %v1586, 1.0
    %v1588 = vrcp.pop %v1587
    %v1589 = vmul.f32 1.0, %v1588
    %1590 = vrot.lane.b32.xlu0 %v1589, 96
    %v1591 = vpop.permute.xlu0 %1590
    %1592 = vrot.lane.b32.xlu0 %v1589, 64
    %v1593 = vpop.permute.xlu0 %1592
    %1594 = vrot.lane.b32.xlu0 %v1589, 32
    %v1595 = vpop.permute.xlu0 %1594
    %v1596 = vmul.f32 %v1593, %v1491
    %v1597 = vmul.f32 %v1591, %v1583
    %v1598 = vadd.f32 %v1596, %v1597
    %v1599 = vtanh.pop %v1598
    %v1600 = vmul.f32 %v1595, %v1599
    %v1603 = vunpack.c.l.s4 1966171168
    %v1604 = vunpack.c.0.s8 %v1603
    %v1605 = vlaneseq
    %v1606 = vshrl.u32 %v1605, 7
    %v1607 = vsub.s32 %v1604, %v1606
    %v1608 = vrot.slane %v452, %v1607
    %v1609 = vcombine.high %v1608, %v1608
    %v1611 = vunpack.c.l.s4 1966171168
    %v1612 = vunpack.c.0.s8 %v1611
    %v1613 = vlaneseq
    %v1614 = vshrl.u32 %v1613, 7
    %v1615 = vsub.s32 %v1612, %v1614
    %v1616 = vrot.slane %v1608, %v1615
    %v1618 = vunpack.c.l.s4 1966171168
    %v1619 = vunpack.c.0.s8 %v1618
    %v1620 = vlaneseq
    %v1621 = vshrl.u32 %v1620, 7
    %v1622 = vsub.s32 %v1619, %v1621
    %v1623 = vrot.slane %v1609, %v1622
    %v1628 = vunpack.c.l.s4 1966171168
    %v1629 = vunpack.c.0.s8 %v1628
    %v1630 = vlaneseq
    %v1631 = vshrl.u32 %v1630, 7
    %v1632 = vsub.s32 %v1629, %v1631
    %v1633 = vrot.slane %v627, %v1632
    %v1634 = vcombine.high %v1633, %v1633
    %v1636 = vunpack.c.l.s4 1966171168
    %v1637 = vunpack.c.0.s8 %v1636
    %v1638 = vlaneseq
    %v1639 = vshrl.u32 %v1638, 7
    %v1640 = vsub.s32 %v1637, %v1639
    %v1641 = vrot.slane %v1633, %v1640
    %v1643 = vunpack.c.l.s4 1966171168
    %v1644 = vunpack.c.0.s8 %v1643
    %v1645 = vlaneseq
    %v1646 = vshrl.u32 %v1645, 7
    %v1647 = vsub.s32 %v1644, %v1646
    %v1648 = vrot.slane %v1634, %v1647
    %v1651 = vunpack.c.l.s4 1966171168
    %v1652 = vunpack.c.0.s8 %v1651
    %v1653 = vlaneseq
    %v1654 = vshrl.u32 %v1653, 7
    %v1655 = vsub.s32 %v1652, %v1654
    %v1656 = vrot.slane %v802, %v1655
    %v1657 = vcombine.high %v1656, %v1656
    %v1659 = vunpack.c.l.s4 1966171168
    %v1660 = vunpack.c.0.s8 %v1659
    %v1661 = vlaneseq
    %v1662 = vshrl.u32 %v1661, 7
    %v1663 = vsub.s32 %v1660, %v1662
    %v1664 = vrot.slane %v1656, %v1663
    %v1666 = vunpack.c.l.s4 1966171168
    %v1667 = vunpack.c.0.s8 %v1666
    %v1668 = vlaneseq
    %v1669 = vshrl.u32 %v1668, 7
    %v1670 = vsub.s32 %v1667, %v1669
    %v1671 = vrot.slane %v1657, %v1670
    %v1674 = vunpack.c.l.s4 1966171168
    %v1675 = vunpack.c.0.s8 %v1674
    %v1676 = vlaneseq
    %v1677 = vshrl.u32 %v1676, 7
    %v1678 = vsub.s32 %v1675, %v1677
    %v1679 = vrot.slane %v968, %v1678
    %v1680 = vcombine.high %v1679, %v1679
    %v1682 = vunpack.c.l.s4 1966171168
    %v1683 = vunpack.c.0.s8 %v1682
    %v1684 = vlaneseq
    %v1685 = vshrl.u32 %v1684, 7
    %v1686 = vsub.s32 %v1683, %v1685
    %v1687 = vrot.slane %v1679, %v1686
    %v1689 = vunpack.c.l.s4 1966171168
    %v1690 = vunpack.c.0.s8 %v1689
    %v1691 = vlaneseq
    %v1692 = vshrl.u32 %v1691, 7
    %v1693 = vsub.s32 %v1690, %v1692
    %v1694 = vrot.slane %v1680, %v1693
    %v1697 = vunpack.c.l.s4 1966171168
    %v1698 = vunpack.c.0.s8 %v1697
    %v1699 = vlaneseq
    %v1700 = vshrl.u32 %v1699, 7
    %v1701 = vsub.s32 %v1698, %v1700
    %v1702 = vrot.slane %v1143, %v1701
    %v1703 = vcombine.high %v1702, %v1702
    %v1705 = vunpack.c.l.s4 1966171168
    %v1706 = vunpack.c.0.s8 %v1705
    %v1707 = vlaneseq
    %v1708 = vshrl.u32 %v1707, 7
    %v1709 = vsub.s32 %v1706, %v1708
    %v1710 = vrot.slane %v1702, %v1709
    %v1712 = vunpack.c.l.s4 1966171168
    %v1713 = vunpack.c.0.s8 %v1712
    %v1714 = vlaneseq
    %v1715 = vshrl.u32 %v1714, 7
    %v1716 = vsub.s32 %v1713, %v1715
    %v1717 = vrot.slane %v1703, %v1716
    %v1720 = vunpack.c.l.s4 1966171168
    %v1721 = vunpack.c.0.s8 %v1720
    %v1722 = vlaneseq
    %v1723 = vshrl.u32 %v1722, 7
    %v1724 = vsub.s32 %v1721, %v1723
    %v1725 = vrot.slane %v1318, %v1724
    %v1726 = vcombine.high %v1725, %v1725
    %v1728 = vunpack.c.l.s4 1966171168
    %v1729 = vunpack.c.0.s8 %v1728
    %v1730 = vlaneseq
    %v1731 = vshrl.u32 %v1730, 7
    %v1732 = vsub.s32 %v1729, %v1731
    %v1733 = vrot.slane %v1725, %v1732
    %v1735 = vunpack.c.l.s4 1966171168
    %v1736 = vunpack.c.0.s8 %v1735
    %v1737 = vlaneseq
    %v1738 = vshrl.u32 %v1737, 7
    %v1739 = vsub.s32 %v1736, %v1738
    %v1740 = vrot.slane %v1726, %v1739
    %v1743 = vunpack.c.l.s4 1966171168
    %v1744 = vunpack.c.0.s8 %v1743
    %v1745 = vlaneseq
    %v1746 = vshrl.u32 %v1745, 7
    %v1747 = vsub.s32 %v1744, %v1746
    %v1748 = vrot.slane %v1493, %v1747
    %v1749 = vcombine.high %v1748, %v1748
    %v1751 = vunpack.c.l.s4 1966171168
    %v1752 = vunpack.c.0.s8 %v1751
    %v1753 = vlaneseq
    %v1754 = vshrl.u32 %v1753, 7
    %v1755 = vsub.s32 %v1752, %v1754
    %v1756 = vrot.slane %v1748, %v1755
    %v1758 = vunpack.c.l.s4 1966171168
    %v1759 = vunpack.c.0.s8 %v1758
    %v1760 = vlaneseq
    %v1761 = vshrl.u32 %v1760, 7
    %v1762 = vsub.s32 %v1759, %v1761
    %v1763 = vrot.slane %v1749, %v1762
    %v1766 = vunpack.c.l.s4 1966171168
    %v1767 = vunpack.c.0.s8 %v1766
    %v1768 = vlaneseq
    %v1769 = vshrl.u32 %v1768, 7
    %v1770 = vsub.s32 %v1767, %v1769
    %v1771 = vrot.slane %v1600, %v1770
    %v1772 = vcombine.high %v1771, %v1771
    %v1774 = vunpack.c.l.s4 1966171168
    %v1775 = vunpack.c.0.s8 %v1774
    %v1776 = vlaneseq
    %v1777 = vshrl.u32 %v1776, 7
    %v1778 = vsub.s32 %v1775, %v1777
    %v1779 = vrot.slane %v1771, %v1778
    %v1781 = vunpack.c.l.s4 1966171168
    %v1782 = vunpack.c.0.s8 %v1781
    %v1783 = vlaneseq
    %v1784 = vshrl.u32 %v1783, 7
    %v1785 = vsub.s32 %v1782, %v1784
    %v1786 = vrot.slane %v1772, %v1785
    %v1787 = vlaneseq
    %v1788 = vshrl.u32 %v1787, 7
    %v1789 = vsub.s32 0, %v1788
    %v1790 = vrot.slane %v1641, %v1789
    %v1791 = vlaneseq
    %v1792 = vshrl.u32 %v1791, 7
    %v1793 = vsub.s32 0, %v1792
    %v1794 = vrot.slane %v1648, %v1793
    %v1797 = vlaneseq
    %v1798 = vshrl.u32 %v1797, 7
    %v1799 = vsub.s32 0, %v1798
    %v1800 = vrot.slane %v1664, %v1799
    %v1801 = vlaneseq
    %v1802 = vshrl.u32 %v1801, 7
    %v1803 = vsub.s32 0, %v1802
    %v1804 = vrot.slane %v1671, %v1803
    %v1807 = vlaneseq
    %v1808 = vshrl.u32 %v1807, 7
    %v1809 = vsub.s32 0, %v1808
    %v1810 = vrot.slane %v1687, %v1809
    %v1811 = vlaneseq
    %v1812 = vshrl.u32 %v1811, 7
    %v1813 = vsub.s32 0, %v1812
    %v1814 = vrot.slane %v1694, %v1813
    %v1817 = vlaneseq
    %v1818 = vshrl.u32 %v1817, 7
    %v1819 = vsub.s32 0, %v1818
    %v1820 = vrot.slane %v1710, %v1819
    %v1821 = vlaneseq
    %v1822 = vshrl.u32 %v1821, 7
    %v1823 = vsub.s32 0, %v1822
    %v1824 = vrot.slane %v1717, %v1823
    %v1827 = vlaneseq
    %v1828 = vshrl.u32 %v1827, 7
    %v1829 = vsub.s32 0, %v1828
    %v1830 = vrot.slane %v1733, %v1829
    %v1831 = vlaneseq
    %v1832 = vshrl.u32 %v1831, 7
    %v1833 = vsub.s32 0, %v1832
    %v1834 = vrot.slane %v1740, %v1833
    %v1837 = vlaneseq
    %v1838 = vshrl.u32 %v1837, 7
    %v1839 = vsub.s32 0, %v1838
    %v1840 = vrot.slane %v1756, %v1839
    %v1841 = vlaneseq
    %v1842 = vshrl.u32 %v1841, 7
    %v1843 = vsub.s32 0, %v1842
    %v1844 = vrot.slane %v1763, %v1843
    %v1847 = vlaneseq
    %v1848 = vshrl.u32 %v1847, 7
    %v1849 = vsub.s32 0, %v1848
    %v1850 = vrot.slane %v1779, %v1849
    %v1851 = vlaneseq
    %v1852 = vshrl.u32 %v1851, 7
    %v1853 = vsub.s32 0, %v1852
    %v1854 = vrot.slane %v1786, %v1853
    %vm1857 = vcmask 1040384
    %v1858 = vsel %vm1857, %v1616, %v1790
    %v1859 = vsel %vm1857, %v1623, %v1794
    %vm1860 = vcmask 1041408
    %v1861 = vsel %vm1860, %v1858, %v1800
    %v1862 = vsel %vm1860, %v1859, %v1804
    %vm1863 = vcmask 1042432
    %v1864 = vsel %vm1863, %v1861, %v1810
    %v1865 = vsel %vm1863, %v1862, %v1814
    %vm1866 = vcmask 1043456
    %v1867 = vsel %vm1866, %v1864, %v1820
    %v1868 = vsel %vm1866, %v1865, %v1824
    %vm1869 = vcmask 1044480
    %v1870 = vsel %vm1869, %v1867, %v1830
    %v1871 = vsel %vm1869, %v1868, %v1834
    %vm1872 = vcmask 1045504
    %v1873 = vsel %vm1872, %v1870, %v1840
    %v1874 = vsel %vm1872, %v1871, %v1844
    %vm1875 = vcmask 1046528
    %v1876 = vsel %vm1875, %v1873, %v1850
    %v1877 = vsel %vm1875, %v1874, %v1854
    %v1880 = vunpack.c.l.s4 1966171168
    %v1881 = vunpack.c.0.s8 %v1880
    %v1882 = vlaneseq
    %v1883 = vshrl.u32 %v1882, 7
    %v1884 = vsub.s32 %v1881, %v1883
    %v1885 = vrot.slane %v89, %v1884
    %v1886 = vcombine.high %v1885, %v1885
    %v1888 = vunpack.c.l.s4 1966171168
    %v1889 = vunpack.c.0.s8 %v1888
    %v1890 = vlaneseq
    %v1891 = vshrl.u32 %v1890, 7
    %v1892 = vsub.s32 %v1889, %v1891
    %v1893 = vrot.slane %v1885, %v1892
    %v1895 = vunpack.c.l.s4 1966171168
    %v1896 = vunpack.c.0.s8 %v1895
    %v1897 = vlaneseq
    %v1898 = vshrl.u32 %v1897, 7
    %v1899 = vsub.s32 %v1896, %v1898
    %v1900 = vrot.slane %v1886, %v1899
    %v1901 = vlaneseq
    %v1902 = vshrl.u32 %v1901, 7
    %v1903 = vsub.s32 0, %v1902
    %v1904 = vrot.slane %v1893, %v1903
    %v1905 = vlaneseq
    %v1906 = vshrl.u32 %v1905, 7
    %v1907 = vsub.s32 0, %v1906
    %v1908 = vrot.slane %v1900, %v1907
    %v1911 = vmul.f32 %v1876, %v1904
    %v1912 = vmul.f32 %v1877, %v1908
    %v1913 = vsel %vm132, %v1911, 0.0
    %1914 = vadd.xlane.f32.xlu0 %v1913
    %v1915 = vpop.xlane.xlu0 %1914
    %v1916 = vsel %vm132, %v1912, 0.0
    %1917 = vadd.xlane.f32.xlu0 %v1916
    %v1918 = vpop.xlane.xlu0 %1917
    %v1920 = vlaneseq
    %v1921 = vshrl.u32 %v1920, 7
    %v1922 = vsub.s32 0, %v1921
    %v1923 = vrot.slane %v88, %v1922
    %1925 = vbcast.lane.b32.xlu0 %v1923, 256
    %v1926 = vpop.permute.xlu0 %1925
    %v1927 = vlaneseq
    %v1928 = vshrl.u32 %v1927, 7
    %v1929 = vsub.s32 1, %v1928
    %v1930 = vrot.slane %v88, %v1929
    %1932 = vbcast.lane.b32.xlu0 %v1930, 256
    %v1933 = vpop.permute.xlu0 %1932
    %v1936 = vmul.f32 %v1915, %v1926
    %v1937 = vmul.f32 %v1918, %v1933
    %v1938 = vmul.f32 %v1936, 1.442695
    %v1939 = vpow.pop %v1938
    %v1940 = vmul.f32 %v1937, 1.442695
    %v1941 = vpow.pop %v1940
    %v1942 = vmul.f32 %v1939, %v1926
    %v1943 = vmul.f32 %v1941, %v1933
    %1946 = vset.pattern.permute.xlu0 0
    %1947 = vperm.xlu0 %1946, %v1942
    %v1948 = vpop.permute.xlu0 %1947
    %1949 = vset.pattern.permute.xlu0 0
    %1950 = vperm.xlu0 %1949, %v1943
    %v1951 = vpop.permute.xlu0 %1950
    %v1952 = vlaneseq
    %v1953 = vand.u32 %v1952, 127
    %v1954 = vlaneseq
    %v1955 = vshrl.u32 %v1954, 7
    %v1956 = vsub.s32 %v1953, %v1955
    %v1957 = vrot.slane %v1948, %v1956
    %v1958 = vlaneseq
    %v1959 = vshrl.u32 %v1958, 7
    %v1960 = vsub.s32 %v1953, %v1959
    %v1961 = vrot.slane %v1951, %v1960
    %vm1962 = vcmask 1041409
    %v1963 = vsel %vm1962, %v1961, %v1957
    %vm1965 = vcmask 58368
    %v1966 = vsel %vm1965, %v1963, 0.0
    %1967 = vadd.xlane.f32.xlu0 %v1966
    %v1968 = vpop.xlane.xlu0 %1967
    %v1969 = vmul.f32 %v1936, %v1942
    %v1970 = vmul.f32 %v1937, %v1943
    %1973 = vset.pattern.permute.xlu0 0
    %1974 = vperm.xlu0 %1973, %v1969
    %v1975 = vpop.permute.xlu0 %1974
    %1976 = vset.pattern.permute.xlu0 0
    %1977 = vperm.xlu0 %1976, %v1970
    %v1978 = vpop.permute.xlu0 %1977
    %v1979 = vlaneseq
    %v1980 = vshrl.u32 %v1979, 7
    %v1981 = vsub.s32 %v1953, %v1980
    %v1982 = vrot.slane %v1975, %v1981
    %v1983 = vlaneseq
    %v1984 = vshrl.u32 %v1983, 7
    %v1985 = vsub.s32 %v1953, %v1984
    %v1986 = vrot.slane %v1978, %v1985
    %v1987 = vsel %vm1962, %v1986, %v1982
    %v1989 = vsel %vm1965, %v1987, 0.0
    %1990 = vadd.xlane.f32.xlu0 %v1989
    %v1991 = vpop.xlane.xlu0 %1990
    %v1992 = vrcp.pop %v1968
    %v1993 = vmul.f32 %v1991, %v1992
    %v1994 = vmul.f32 %v1598, %v89
    %vm1995 = vcmask 254976
    %v1996 = vsel %vm1995, %v1994, 0.0
    %1997 = vadd.xlane.f32.xlu0 %v1996
    %v1998 = vpop.xlane.xlu0 %1997
    %v1999 = vmul.f32 %v1993, 0.5
    %v2000 = vmul.f32 %v1998, 0.5
    %v2001 = vadd.f32 %v1999, %v2000
    %vm2002 = vcmask 1024
    %2003 = vst.msk [vmem:[%s9] sm:$0x3] %vm2002, %v2001
    // Predicated region
    $region54: #{tpu_custom_call.1} parent=1 // pred_check
      _
    $region55: #{tpu_custom_call.1} parent=1 // pred_check_branch
      %2005 = sbr.rel (0) target = $region57
    $region56: #{tpu_custom_call.1} parent=1 // pred_region
      _
    $region57: #{tpu_custom_call.1} parent=1 // pred_fallthru
      _
    // Predicated region
    $region58: #{tpu_custom_call.1} parent=1 // pred_check
      _
    $region59: #{tpu_custom_call.1} parent=1 // pred_check_branch
      %2007 = sbr.rel (0) target = $region61
    $region60: #{tpu_custom_call.1} parent=1 // pred_region
      _
    $region61: #{tpu_custom_call.1} parent=1 // pred_fallthru
      _
    %2008 = vsyncpa [#allocation3], 1
    %2009 = vsyncpa [#allocation5], 1
    %2010 = vsyncpa [#allocation8], 1

</llo_original>
